<compile_context>
chip_gen: v6e
topology: v6e:2x2x1
jax: 0.10.0
libtpu: 0.0.40
codegen_flags: <defaults>
</compile_context>

<pallas_src>
import math

import jax
import jax.numpy as jnp
from jax.experimental import pallas as pl
from jax.experimental.pallas import tpu as pltpu

# --------------------------------------------------------------------------
# SLAYER neuron / simulation parameters (in-script stand-in for network.yaml)
# --------------------------------------------------------------------------
THETA   = 10.0    # neuron['theta']
TAU_SR  = 10.0    # neuron['tauSr']  (SRM / PSP alpha kernel time constant)
TAU_REF = 1.0     # neuron['tauRef'] (refractory alpha kernel time constant)
TS      = 1.0     # simulation['Ts'] == 1, so slayerCuda's Ts scaling is a no-op


def alpha_kernel(tau, length, mult=1.0):
    """SLAYER _calculateAlphaKernel: eps(t) = mult * t/tau * exp(1 - t/tau), t = 0, Ts, 2Ts, ..."""
    return [mult * (i * TS) / tau * math.exp(1.0 - (i * TS) / tau) for i in range(length)]


def _ceil_to(x, m):
    return ((x + m - 1) // m) * m


# --------------------------------------------------------------------------
# fc1 (slayer.dense, bias-free) as a K-tiled, column-parallel Pallas matmul.
#   A: (M, K) bf16 spikes,  Bq: (K, Np) int8 quantized weights,  scale: (1, Np) f32.
#   int8 tile -> bf16 in-kernel (exact), f32 accumulation directly into the VMEM-resident
#   output block, per-column dequant scale applied on the last K step.
# --------------------------------------------------------------------------
def _fc1_kernel(a_ref, bq_ref, scale_ref, o_ref):
    k = pl.program_id(1)

    @pl.when(k == 0)
    def _():
        o_ref[...] = jnp.zeros_like(o_ref)

    # int8 weight stream (half the HBM bytes of bf16); values |q| <= 127 are exact in bf16.
    b = bq_ref[...].astype(jnp.bfloat16)
    o_ref[...] += jnp.dot(a_ref[...], b, preferred_element_type=jnp.float32)

    @pl.when(k == pl.num_programs(1) - 1)
    def _():
        # per-output-column dequantization epilogue (tiny: M x tn elements)
        o_ref[...] = o_ref[...] * scale_ref[...]


def _pick_tk(K, want=16384):
    """Largest K tile <= `want` that divides K and is a multiple of 128 (else full K)."""
    if K <= want:
        return K
    for cand in range(want, 0, -128):
        if cand % 128 == 0 and K % cand == 0:
            return cand
    return K


def fc1_matmul(a, bq, scale, tk_want=16384):
    """a: (M, K) bf16, bq: (K, Np) int8, scale: (1, Np) f32 -> (M, Np) f32 dequantized drive."""
    M, K = a.shape
    K2, Np = bq.shape
    assert K == K2 and Np % 128 == 0
    tn = 256 if Np % 256 == 0 else 128          # 2 column tiles at Np=512 -> v7x dual-TC split
    tk = _pick_tk(K, tk_want)
    return pl.pallas_call(
        _fc1_kernel,
        out_shape=jax.ShapeDtypeStruct((M, Np), jnp.float32),
        grid_spec=pltpu.PrefetchScalarGridSpec(
            num_scalar_prefetch=0,
            grid=(Np // tn, K // tk),            # (parallel columns, sequential K reduction)
            in_specs=[
                pl.BlockSpec((M, tk), lambda j, k: (0, k)),
                pl.BlockSpec((tk, tn), lambda j, k: (k, j)),
                pl.BlockSpec((1, tn), lambda j, k: (0, j)),
            ],
            out_specs=pl.BlockSpec((M, tn), lambda j, k: (0, j)),
        ),
        compiler_params=pltpu.CompilerParams(
            dimension_semantics=("parallel", "arbitrary"),
            # full-scale budget: int8 B (16384x256 = 4 MiB) x2 buffers + bf16 temp (8 MiB)
            # + bf16 A (16x16384 = 0.5 MiB) x2 + f32 out block  ->  well under 48 MiB,
            # and under v7x's 64 MiB physical per-TC VMEM.
            vmem_limit_bytes=48 * 1024 * 1024,
        ),
    )(a, bq, scale)


# --------------------------------------------------------------------------
# Fused tail kernel: layer-1 psp+spike, fc2, layer-2 psp+spike — one pallas_call,
# grid over the batch dimension ("parallel" -> both v7x TCs busy, no kron block-diag weights).
#   psp   : causal FIR along time == lower-triangular Toeplitz (T,T) matmul (MXU).
#   spike : sequential threshold over t with vectorized refractory slice-adds
#           (spike amplitude 1/Ts == 1), matching slayerCuda.getSpikes.
# --------------------------------------------------------------------------
def _psp_spike_into(tmat_ref, refk_b, drive, pot_ref, s_ref):
    """drive: (T, L) f32 value; pot_ref scratch, s_ref destination (scratch or output block)."""
    T = drive.shape[0]
    # PSP: pot[t] = sum_{s<=t} srm[t-s] * drive[s]   (one small MXU contraction)
    pot_ref[...] = jnp.dot(tmat_ref[...], drive, preferred_element_type=jnp.float32)
    for t in range(T):
        spk = (pot_ref[t:t + 1, :] >= THETA).astype(jnp.float32)        # (1, L)
        s_ref[t:t + 1, :] = spk
        if t + 1 < T:                                                    # refk[0] == 0
            pot_ref[t + 1:T, :] += refk_b[1:T - t, :] * spk              # vectorized refractory add


def _tail_kernel(tmat_ref, refk_ref, a1_ref, w2_ref, o_ref, pot1_ref, s1_ref, pot2_ref):
    T, HIDP = a1_ref.shape
    OUTP = o_ref.shape[-1]
    # refk arrives as a (T, 1) column; hoist the lane-broadcast once per layer width.
    refk1 = jnp.broadcast_to(refk_ref[...], (T, HIDP))
    refk2 = jnp.broadcast_to(refk_ref[...], (T, OUTP))
    # layer 1: spike(psp(fc1(x)))  -- fc1 drive precomputed by the fc1 kernel
    _psp_spike_into(tmat_ref, refk1, a1_ref[...], pot1_ref, s1_ref)
    # layer 2: spike(psp(fc2(layer1)))
    drive2 = jnp.dot(s1_ref[...], w2_ref[...], preferred_element_type=jnp.float32)
    _psp_spike_into(tmat_ref, refk2, drive2, pot2_ref, o_ref)


def _time_kernels(T):
    srm = alpha_kernel(TAU_SR, T)                      # slayer.srmKernel (causal, exact for T taps)
    tmat = jnp.array(
        [[srm[t - s] if t >= s else 0.0 for s in range(T)] for t in range(T)],
        dtype=jnp.float32,
    )
    refk = jnp.array(alpha_kernel(TAU_REF, T, mult=-2.0 * THETA), dtype=jnp.float32)
    return tmat, refk.reshape(T, 1)                    # (T, T), (T, 1)


def tail_call(tmat, refk, a1, w2p):
    """a1: (N, T, HIDP) f32 fc1 drive, w2p: (HIDP, OUTP) f32 -> (N, T, OUTP) layer-2 spikes."""
    N, T, HIDP = a1.shape
    OUTP = w2p.shape[1]
    return pl.pallas_call(
        _tail_kernel,
        out_shape=jax.ShapeDtypeStruct((N, T, OUTP), jnp.float32),
        grid_spec=pltpu.PrefetchScalarGridSpec(
            num_scalar_prefetch=0,
            grid=(N,),
            in_specs=[
                pl.BlockSpec((T, T), lambda n: (0, 0)),
                pl.BlockSpec((T, 1), lambda n: (0, 0)),
                pl.BlockSpec((None, T, HIDP), lambda n: (n, 0, 0)),
                pl.BlockSpec((HIDP, OUTP), lambda n: (0, 0)),
            ],
            out_specs=pl.BlockSpec((None, T, OUTP), lambda n: (n, 0, 0)),
            scratch_shapes=[
                pltpu.VMEM((T, HIDP), jnp.float32),    # pot1
                pltpu.VMEM((T, HIDP), jnp.float32),    # s1 (layer-1 spikes)
                pltpu.VMEM((T, OUTP), jnp.float32),    # pot2
            ],
        ),
        compiler_params=pltpu.CompilerParams(
            dimension_semantics=("parallel",),
        ),
    )(tmat, refk, a1, w2p)


# --------------------------------------------------------------------------
# Weight quantization (done once at "init", like the original bf16 cast):
# int8 per-output-column symmetric quantization + lane-padding of the hidden dim to 128.
# --------------------------------------------------------------------------
def quantize_w1(w1, hid_pad):
    F, HID = w1.shape
    w1p = jnp.zeros((F, hid_pad), jnp.float32).at[:, :HID].set(w1.astype(jnp.float32))
    amax = jnp.max(jnp.abs(w1p), axis=0)
    scale = jnp.where(amax > 0, amax / 127.0, 1.0)                       # pad columns -> scale 1, q 0
    w1q = jnp.clip(jnp.round(w1p / scale[None, :]), -127, 127).astype(jnp.int8)
    return w1q, scale[None, :].astype(jnp.float32)                       # (F, hid_pad) i8, (1, hid_pad) f32


# --------------------------------------------------------------------------
# Full Network.forward
# --------------------------------------------------------------------------
def network_forward(x, w1q, w1_scale, w2):
    """x: (N, C, H, W, T) spikes (SLAYER layout).  w1q/w1_scale: int8 fc1 weights flattened in
    (C, H, W) order (Conv3d reduction order), hidden dim padded to a multiple of 128.
    w2: (410, 10).  Returns (N, 10, 1, 1, T) output spikes (PyTorch SLAYER layout)."""
    N, C, H, W, T = x.shape
    F = C * H * W
    assert w1q.shape[0] == F, "w1 must be flattened in (C, H, W) order to match Conv3d"
    HIDP = w1q.shape[1]
    HID, OUT = w2.shape
    OUTP = _ceil_to(OUT, 128)

    # ---- fc1: per-timestep dense.  Cast BEFORE the relayout so the transpose writes bf16. ----
    xt = jnp.transpose(x.astype(jnp.bfloat16), (0, 4, 1, 2, 3)).reshape(N * T, F)
    a1 = fc1_matmul(xt, w1q, w1_scale)                   # (N*T, HIDP) f32, rows are (n, t) n-major
    a1 = a1.reshape(N, T, HIDP)                          # metadata-only reshape

    # ---- fused tail: spike(psp(.)) -> fc2 -> spike(psp(.)), one kernel, grid over batch ----
    # Padded rows/cols of w2p are zero and padded lanes never spike (THETA > 0), so padding is inert.
    w2p = jnp.zeros((HIDP, OUTP), jnp.float32).at[:HID, :OUT].set(w2.astype(jnp.float32))
    tmat, refk = _time_kernels(T)
    s2 = tail_call(tmat, refk, a1, w2p)                  # (N, T, OUTP)

    s2 = s2[:, :, :OUT]                                  # drop lane padding
    return jnp.transpose(s2, (0, 2, 1)).reshape(N, OUT, 1, 1, T)


if __name__ == "__main__":
    key = jax.random.PRNGKey(0)
    k0, k1, k2 = jax.random.split(key, 3)

    # SMALL shapes consistent with the module's forward (dense over the full spatial extent ==
    # per-timestep FC): spatial reduced from (128, 128, 2) to (32, 32, 2); hidden/out kept at 410/10.
    N, C, H, W, T = 2, 2, 32, 32, 8
    F = C * H * W                       # 2048
    HIDDEN, OUT = 410, 10
    HIDP = _ceil_to(HIDDEN, 128)        # 512

    # Deterministic synthetic parameters (slayer.dense has no bias; weightScale folded into init).
    x = (jax.random.uniform(k0, (N, C, H, W, T)) < 0.1).astype(jnp.bfloat16)  # DVS-like input spikes
    w1 = jax.random.normal(k1, (F, HIDDEN), jnp.float32) * 0.05
    w2 = jax.random.normal(k2, (HIDDEN, OUT), jnp.float32) * 0.5

    # fc1 is weight-stream bound -> quantize its weight stream to int8 at init.
    # (Reference divergence: PyTorch keeps f32 weights; spikes near threshold may flip.)
    w1q, w1_scale = quantize_w1(w1, HIDP)

    out = jax.jit(network_forward)(x, w1q, w1_scale, w2)
    jax.block_until_ready(out)
    assert out.shape == (N, OUT, 1, 1, T)
    assert out.dtype == jnp.float32
    print("KERNEL_OK")
</pallas_src>

<mosaic_0001>
module attributes {stable_mosaic.version = 11 : i64} {
  func.func @_fc1_kernel(%arg0: i32, %arg1: i32, %arg2: memref<16x2048xbf16, #tpu.memory_space<vmem>>, %arg3: memref<2048x256xi8, #tpu.memory_space<vmem>>, %arg4: memref<1x256xf32, #tpu.memory_space<vmem>>, %arg5: memref<16x256xf32, #tpu.memory_space<vmem>>) attributes {dimension_semantics = [#tpu.dimension_semantics<parallel>, #tpu.dimension_semantics<arbitrary>], iteration_bounds = array<i64: 2, 1>, scalar_prefetch = 0 : i64, scratch_operands = 0 : i64, tpu.core_type = #tpu.core_type<tc>, window_params = [{transform_indices = @transform_0, window_bounds = array<i64: 16, 2048>}, {transform_indices = @transform_1, window_bounds = array<i64: 2048, 256>}, {transform_indices = @transform_2, window_bounds = array<i64: 1, 256>}, {transform_indices = @transform_3, window_bounds = array<i64: 16, 256>}]} {
    %c0_i32 = arith.constant 0 : i32
    %0 = arith.cmpi eq, %arg1, %c0_i32 : i32
    %1 = arith.extui %0 : i1 to i32
    %c0_i32_0 = arith.constant 0 : i32
    %2 = arith.cmpi ne, %1, %c0_i32_0 : i32
    scf.if %2 {
      %cst_10 = arith.constant 0.000000e+00 : f32
      %13 = vector.broadcast %cst_10 : f32 to vector<16x256xf32>
      %c0_11 = arith.constant 0 : index
      %c0_12 = arith.constant 0 : index
      %14 = vector.load %arg5[%c0_11, %c0_12] : memref<16x256xf32, #tpu.memory_space<vmem>>, vector<16x256xf32>
      tpu.vector_store %arg5[%c0_11, %c0_12], %13 {strides = array<i32>} : memref<16x256xf32, #tpu.memory_space<vmem>>, vector<16x256xf32>,
    } else {
    }
    %c0 = arith.constant 0 : index
    %c0_1 = arith.constant 0 : index
    %3 = vector.load %arg3[%c0, %c0_1] : memref<2048x256xi8, #tpu.memory_space<vmem>>, vector<2048x256xi8>
    %4 = arith.sitofp %3 : vector<2048x256xi8> to vector<2048x256xbf16>
    %c0_2 = arith.constant 0 : index
    %c0_3 = arith.constant 0 : index
    %5 = vector.load %arg5[%c0_2, %c0_3] : memref<16x256xf32, #tpu.memory_space<vmem>>, vector<16x256xf32>
    %c0_4 = arith.constant 0 : index
    %c0_5 = arith.constant 0 : index
    %6 = vector.load %arg2[%c0_4, %c0_5] : memref<16x2048xbf16, #tpu.memory_space<vmem>>, vector<16x2048xbf16>
    %cst = arith.constant dense<0.000000e+00> : vector<16x256xf32>
    %7 = tpu.matmul %6, %4, %cst {dimension_numbers = #tpu.dot_dimension_numbers<[1], [0], [0], [1], [0, 0, 1, 1], [], []>} : vector<16x2048xbf16>, vector<2048x256xbf16>, vector<16x256xf32> -> vector<16x256xf32>
    %8 = arith.addf %5, %7 : vector<16x256xf32>
    %c0_6 = arith.constant 0 : index
    %c0_7 = arith.constant 0 : index
    %9 = vector.load %arg5[%c0_6, %c0_7] : memref<16x256xf32, #tpu.memory_space<vmem>>, vector<16x256xf32>
    tpu.vector_store %arg5[%c0_6, %c0_7], %8 {strides = array<i32>} : memref<16x256xf32, #tpu.memory_space<vmem>>, vector<16x256xf32>,
    %c0_i32_8 = arith.constant 0 : i32
    %10 = arith.cmpi eq, %arg1, %c0_i32_8 : i32
    %11 = arith.extui %10 : i1 to i32
    %c0_i32_9 = arith.constant 0 : i32
    %12 = arith.cmpi ne, %11, %c0_i32_9 : i32
    scf.if %12 {
      %c0_10 = arith.constant 0 : index
      %c0_11 = arith.constant 0 : index
      %13 = vector.load %arg5[%c0_10, %c0_11] : memref<16x256xf32, #tpu.memory_space<vmem>>, vector<16x256xf32>
      %c0_12 = arith.constant 0 : index
      %c0_13 = arith.constant 0 : index
      %14 = vector.load %arg4[%c0_12, %c0_13] : memref<1x256xf32, #tpu.memory_space<vmem>>, vector<1x256xf32>
      %15 = vector.broadcast %14 : vector<1x256xf32> to vector<16x256xf32>
      %16 = arith.mulf %13, %15 : vector<16x256xf32>
      %c0_14 = arith.constant 0 : index
      %c0_15 = arith.constant 0 : index
      %17 = vector.load %arg5[%c0_14, %c0_15] : memref<16x256xf32, #tpu.memory_space<vmem>>, vector<16x256xf32>
      tpu.vector_store %arg5[%c0_14, %c0_15], %16 {strides = array<i32>} : memref<16x256xf32, #tpu.memory_space<vmem>>, vector<16x256xf32>,
    } else {
    }
    return
  }
  func.func @transform_0(%arg0: i32, %arg1: i32) -> (i32, i32) {
    %c0_i32 = arith.constant 0 : i32
    %c0_i32_0 = arith.constant 0 : i32
    return %c0_i32, %arg1 : i32, i32
  }
  func.func @transform_1(%arg0: i32, %arg1: i32) -> (i32, i32) {
    %c0_i32 = arith.constant 0 : i32
    return %arg1, %arg0 : i32, i32
  }
  func.func @transform_2(%arg0: i32, %arg1: i32) -> (i32, i32) {
    %c0_i32 = arith.constant 0 : i32
    %c0_i32_0 = arith.constant 0 : i32
    return %c0_i32, %arg0 : i32, i32
  }
  func.func @transform_3(%arg0: i32, %arg1: i32) -> (i32, i32) {
    %c0_i32 = arith.constant 0 : i32
    %c0_i32_0 = arith.constant 0 : i32
    return %c0_i32, %arg0 : i32, i32
  }
}

module attributes {stable_mosaic.version = 11 : i64} {
  func.func @_tail_kernel(%arg0: i32, %arg1: memref<8x8xf32, #tpu.memory_space<vmem>>, %arg2: memref<8x1xf32, #tpu.memory_space<vmem>>, %arg3: memref<1x8x512xf32, #tpu.memory_space<vmem>>, %arg4: memref<512x128xf32, #tpu.memory_space<vmem>>, %arg5: memref<1x8x128xf32, #tpu.memory_space<vmem>>, %arg6: memref<8x512xf32, #tpu.memory_space<vmem>>, %arg7: memref<8x512xf32, #tpu.memory_space<vmem>>, %arg8: memref<8x128xf32, #tpu.memory_space<vmem>>) attributes {dimension_semantics = [#tpu.dimension_semantics<parallel>], iteration_bounds = array<i64: 2>, scalar_prefetch = 0 : i64, scratch_operands = 3 : i64, tpu.core_type = #tpu.core_type<tc>, window_params = [{pipeline_mode = #tpu.pipeline_mode<synchronous>, transform_indices = @transform_0, window_bounds = array<i64: 8, 8>}, {pipeline_mode = #tpu.pipeline_mode<synchronous>, transform_indices = @transform_1, window_bounds = array<i64: 8, 1>}, {transform_indices = @transform_2, window_bounds = array<i64: 1, 8, 512>}, {pipeline_mode = #tpu.pipeline_mode<synchronous>, transform_indices = @transform_3, window_bounds = array<i64: 512, 128>}, {transform_indices = @transform_4, window_bounds = array<i64: 1, 8, 128>}]} {
    %c0 = arith.constant 0 : index
    %c0_0 = arith.constant 0 : index
    %0 = vector.load %arg2[%c0, %c0_0] : memref<8x1xf32, #tpu.memory_space<vmem>>, vector<8x1xf32>
    %1 = vector.shape_cast %0 : vector<8x1xf32> to vector<8x1xf32>
    %2 = vector.broadcast %1 : vector<8x1xf32> to vector<8x512xf32>
    %c0_1 = arith.constant 0 : index
    %c0_2 = arith.constant 0 : index
    %3 = vector.load %arg2[%c0_1, %c0_2] : memref<8x1xf32, #tpu.memory_space<vmem>>, vector<8x1xf32>
    %4 = vector.shape_cast %3 : vector<8x1xf32> to vector<8x1xf32>
    %5 = vector.broadcast %4 : vector<8x1xf32> to vector<8x128xf32>
    %c0_3 = arith.constant 0 : index
    %c0_4 = arith.constant 0 : index
    %c0_5 = arith.constant 0 : index
    %6 = vector.load %arg3[%c0_3, %c0_4, %c0_5] : memref<1x8x512xf32, #tpu.memory_space<vmem>>, vector<1x8x512xf32>
    %7 = vector.shape_cast %6 : vector<1x8x512xf32> to vector<8x512xf32>
    %c0_6 = arith.constant 0 : index
    %c0_7 = arith.constant 0 : index
    %8 = vector.load %arg1[%c0_6, %c0_7] : memref<8x8xf32, #tpu.memory_space<vmem>>, vector<8x8xf32>
    %cst = arith.constant dense<0.000000e+00> : vector<8x512xf32>
    %9 = tpu.matmul %8, %7, %cst {dimension_numbers = #tpu.dot_dimension_numbers<[1], [0], [0], [1], [0, 0, 1, 1], [], []>} : vector<8x8xf32>, vector<8x512xf32>, vector<8x512xf32> -> vector<8x512xf32>
    %c0_8 = arith.constant 0 : index
    %c0_9 = arith.constant 0 : index
    %10 = vector.load %arg6[%c0_8, %c0_9] : memref<8x512xf32, #tpu.memory_space<vmem>>, vector<8x512xf32>
    tpu.vector_store %arg6[%c0_8, %c0_9], %9 {strides = array<i32>} : memref<8x512xf32, #tpu.memory_space<vmem>>, vector<8x512xf32>,
    %c0_10 = arith.constant 0 : index
    %c0_11 = arith.constant 0 : index
    %11 = vector.load %arg6[%c0_10, %c0_11] : memref<8x512xf32, #tpu.memory_space<vmem>>, vector<1x512xf32>
    %cst_12 = arith.constant 1.000000e+01 : f32
    %12 = vector.broadcast %cst_12 : f32 to vector<1x512xf32>
    %13 = arith.cmpf oge, %11, %12 : vector<1x512xf32>
    %14 = arith.extui %13 : vector<1x512xi1> to vector<1x512xi32>
    %15 = arith.sitofp %14 : vector<1x512xi32> to vector<1x512xf32>
    %c0_13 = arith.constant 0 : index
    %c0_14 = arith.constant 0 : index
    %16 = vector.load %arg7[%c0_13, %c0_14] : memref<8x512xf32, #tpu.memory_space<vmem>>, vector<1x512xf32>
    tpu.vector_store %arg7[%c0_13, %c0_14], %15 {strides = array<i32>} : memref<8x512xf32, #tpu.memory_space<vmem>>, vector<1x512xf32>,
    %c1 = arith.constant 1 : index
    %c0_15 = arith.constant 0 : index
    %17 = vector.load %arg6[%c1, %c0_15] : memref<8x512xf32, #tpu.memory_space<vmem>>, vector<7x512xf32>
    %18 = vector.extract_strided_slice %2 {offsets = [1, 0], sizes = [7, 512], strides = [1, 1]} : vector<8x512xf32> to vector<7x512xf32>
    %19 = vector.broadcast %15 : vector<1x512xf32> to vector<7x512xf32>
    %20 = arith.mulf %18, %19 : vector<7x512xf32>
    %21 = arith.addf %17, %20 : vector<7x512xf32>
    %c1_16 = arith.constant 1 : index
    %c0_17 = arith.constant 0 : index
    %22 = vector.load %arg6[%c1_16, %c0_17] : memref<8x512xf32, #tpu.memory_space<vmem>>, vector<7x512xf32>
    tpu.vector_store %arg6[%c1_16, %c0_17], %21 {strides = array<i32>} : memref<8x512xf32, #tpu.memory_space<vmem>>, vector<7x512xf32>,
    %c1_18 = arith.constant 1 : index
    %c0_19 = arith.constant 0 : index
    %23 = vector.load %arg6[%c1_18, %c0_19] : memref<8x512xf32, #tpu.memory_space<vmem>>, vector<1x512xf32>
    %cst_20 = arith.constant 1.000000e+01 : f32
    %24 = vector.broadcast %cst_20 : f32 to vector<1x512xf32>
    %25 = arith.cmpf oge, %23, %24 : vector<1x512xf32>
    %26 = arith.extui %25 : vector<1x512xi1> to vector<1x512xi32>
    %27 = arith.sitofp %26 : vector<1x512xi32> to vector<1x512xf32>
    %c1_21 = arith.constant 1 : index
    %c0_22 = arith.constant 0 : index
    %28 = vector.load %arg7[%c1_21, %c0_22] : memref<8x512xf32, #tpu.memory_space<vmem>>, vector<1x512xf32>
    tpu.vector_store %arg7[%c1_21, %c0_22], %27 {strides = array<i32>} : memref<8x512xf32, #tpu.memory_space<vmem>>, vector<1x512xf32>,
    %c2 = arith.constant 2 : index
    %c0_23 = arith.constant 0 : index
    %29 = vector.load %arg6[%c2, %c0_23] : memref<8x512xf32, #tpu.memory_space<vmem>>, vector<6x512xf32>
    %30 = vector.extract_strided_slice %2 {offsets = [1, 0], sizes = [6, 512], strides = [1, 1]} : vector<8x512xf32> to vector<6x512xf32>
    %31 = vector.broadcast %27 : vector<1x512xf32> to vector<6x512xf32>
    %32 = arith.mulf %30, %31 : vector<6x512xf32>
    %33 = arith.addf %29, %32 : vector<6x512xf32>
    %c2_24 = arith.constant 2 : index
    %c0_25 = arith.constant 0 : index
    %34 = vector.load %arg6[%c2_24, %c0_25] : memref<8x512xf32, #tpu.memory_space<vmem>>, vector<6x512xf32>
    tpu.vector_store %arg6[%c2_24, %c0_25], %33 {strides = array<i32>} : memref<8x512xf32, #tpu.memory_space<vmem>>, vector<6x512xf32>,
    %c2_26 = arith.constant 2 : index
    %c0_27 = arith.constant 0 : index
    %35 = vector.load %arg6[%c2_26, %c0_27] : memref<8x512xf32, #tpu.memory_space<vmem>>, vector<1x512xf32>
    %cst_28 = arith.constant 1.000000e+01 : f32
    %36 = vector.broadcast %cst_28 : f32 to vector<1x512xf32>
    %37 = arith.cmpf oge, %35, %36 : vector<1x512xf32>
    %38 = arith.extui %37 : vector<1x512xi1> to vector<1x512xi32>
    %39 = arith.sitofp %38 : vector<1x512xi32> to vector<1x512xf32>
    %c2_29 = arith.constant 2 : index
    %c0_30 = arith.constant 0 : index
    %40 = vector.load %arg7[%c2_29, %c0_30] : memref<8x512xf32, #tpu.memory_space<vmem>>, vector<1x512xf32>
    tpu.vector_store %arg7[%c2_29, %c0_30], %39 {strides = array<i32>} : memref<8x512xf32, #tpu.memory_space<vmem>>, vector<1x512xf32>,
    %c3 = arith.constant 3 : index
    %c0_31 = arith.constant 0 : index
    %41 = vector.load %arg6[%c3, %c0_31] : memref<8x512xf32, #tpu.memory_space<vmem>>, vector<5x512xf32>
    %42 = vector.extract_strided_slice %2 {offsets = [1, 0], sizes = [5, 512], strides = [1, 1]} : vector<8x512xf32> to vector<5x512xf32>
    %43 = vector.broadcast %39 : vector<1x512xf32> to vector<5x512xf32>
    %44 = arith.mulf %42, %43 : vector<5x512xf32>
    %45 = arith.addf %41, %44 : vector<5x512xf32>
    %c3_32 = arith.constant 3 : index
    %c0_33 = arith.constant 0 : index
    %46 = vector.load %arg6[%c3_32, %c0_33] : memref<8x512xf32, #tpu.memory_space<vmem>>, vector<5x512xf32>
    tpu.vector_store %arg6[%c3_32, %c0_33], %45 {strides = array<i32>} : memref<8x512xf32, #tpu.memory_space<vmem>>, vector<5x512xf32>,
    %c3_34 = arith.constant 3 : index
    %c0_35 = arith.constant 0 : index
    %47 = vector.load %arg6[%c3_34, %c0_35] : memref<8x512xf32, #tpu.memory_space<vmem>>, vector<1x512xf32>
    %cst_36 = arith.constant 1.000000e+01 : f32
    %48 = vector.broadcast %cst_36 : f32 to vector<1x512xf32>
    %49 = arith.cmpf oge, %47, %48 : vector<1x512xf32>
    %50 = arith.extui %49 : vector<1x512xi1> to vector<1x512xi32>
    %51 = arith.sitofp %50 : vector<1x512xi32> to vector<1x512xf32>
    %c3_37 = arith.constant 3 : index
    %c0_38 = arith.constant 0 : index
    %52 = vector.load %arg7[%c3_37, %c0_38] : memref<8x512xf32, #tpu.memory_space<vmem>>, vector<1x512xf32>
    tpu.vector_store %arg7[%c3_37, %c0_38], %51 {strides = array<i32>} : memref<8x512xf32, #tpu.memory_space<vmem>>, vector<1x512xf32>,
    %c4 = arith.constant 4 : index
    %c0_39 = arith.constant 0 : index
    %53 = vector.load %arg6[%c4, %c0_39] : memref<8x512xf32, #tpu.memory_space<vmem>>, vector<4x512xf32>
    %54 = vector.extract_strided_slice %2 {offsets = [1, 0], sizes = [4, 512], strides = [1, 1]} : vector<8x512xf32> to vector<4x512xf32>
    %55 = vector.broadcast %51 : vector<1x512xf32> to vector<4x512xf32>
    %56 = arith.mulf %54, %55 : vector<4x512xf32>
    %57 = arith.addf %53, %56 : vector<4x512xf32>
    %c4_40 = arith.constant 4 : index
    %c0_41 = arith.constant 0 : index
    %58 = vector.load %arg6[%c4_40, %c0_41] : memref<8x512xf32, #tpu.memory_space<vmem>>, vector<4x512xf32>
    tpu.vector_store %arg6[%c4_40, %c0_41], %57 {strides = array<i32>} : memref<8x512xf32, #tpu.memory_space<vmem>>, vector<4x512xf32>,
    %c4_42 = arith.constant 4 : index
    %c0_43 = arith.constant 0 : index
    %59 = vector.load %arg6[%c4_42, %c0_43] : memref<8x512xf32, #tpu.memory_space<vmem>>, vector<1x512xf32>
    %cst_44 = arith.constant 1.000000e+01 : f32
    %60 = vector.broadcast %cst_44 : f32 to vector<1x512xf32>
    %61 = arith.cmpf oge, %59, %60 : vector<1x512xf32>
    %62 = arith.extui %61 : vector<1x512xi1> to vector<1x512xi32>
    %63 = arith.sitofp %62 : vector<1x512xi32> to vector<1x512xf32>
    %c4_45 = arith.constant 4 : index
    %c0_46 = arith.constant 0 : index
    %64 = vector.load %arg7[%c4_45, %c0_46] : memref<8x512xf32, #tpu.memory_space<vmem>>, vector<1x512xf32>
    tpu.vector_store %arg7[%c4_45, %c0_46], %63 {strides = array<i32>} : memref<8x512xf32, #tpu.memory_space<vmem>>, vector<1x512xf32>,
    %c5 = arith.constant 5 : index
    %c0_47 = arith.constant 0 : index
    %65 = vector.load %arg6[%c5, %c0_47] : memref<8x512xf32, #tpu.memory_space<vmem>>, vector<3x512xf32>
    %66 = vector.extract_strided_slice %2 {offsets = [1, 0], sizes = [3, 512], strides = [1, 1]} : vector<8x512xf32> to vector<3x512xf32>
    %67 = vector.broadcast %63 : vector<1x512xf32> to vector<3x512xf32>
    %68 = arith.mulf %66, %67 : vector<3x512xf32>
    %69 = arith.addf %65, %68 : vector<3x512xf32>
    %c5_48 = arith.constant 5 : index
    %c0_49 = arith.constant 0 : index
    %70 = vector.load %arg6[%c5_48, %c0_49] : memref<8x512xf32, #tpu.memory_space<vmem>>, vector<3x512xf32>
    tpu.vector_store %arg6[%c5_48, %c0_49], %69 {strides = array<i32>} : memref<8x512xf32, #tpu.memory_space<vmem>>, vector<3x512xf32>,
    %c5_50 = arith.constant 5 : index
    %c0_51 = arith.constant 0 : index
    %71 = vector.load %arg6[%c5_50, %c0_51] : memref<8x512xf32, #tpu.memory_space<vmem>>, vector<1x512xf32>
    %cst_52 = arith.constant 1.000000e+01 : f32
    %72 = vector.broadcast %cst_52 : f32 to vector<1x512xf32>
    %73 = arith.cmpf oge, %71, %72 : vector<1x512xf32>
    %74 = arith.extui %73 : vector<1x512xi1> to vector<1x512xi32>
    %75 = arith.sitofp %74 : vector<1x512xi32> to vector<1x512xf32>
    %c5_53 = arith.constant 5 : index
    %c0_54 = arith.constant 0 : index
    %76 = vector.load %arg7[%c5_53, %c0_54] : memref<8x512xf32, #tpu.memory_space<vmem>>, vector<1x512xf32>
    tpu.vector_store %arg7[%c5_53, %c0_54], %75 {strides = array<i32>} : memref<8x512xf32, #tpu.memory_space<vmem>>, vector<1x512xf32>,
    %c6 = arith.constant 6 : index
    %c0_55 = arith.constant 0 : index
    %77 = vector.load %arg6[%c6, %c0_55] : memref<8x512xf32, #tpu.memory_space<vmem>>, vector<2x512xf32>
    %78 = vector.extract_strided_slice %2 {offsets = [1, 0], sizes = [2, 512], strides = [1, 1]} : vector<8x512xf32> to vector<2x512xf32>
    %79 = vector.broadcast %75 : vector<1x512xf32> to vector<2x512xf32>
    %80 = arith.mulf %78, %79 : vector<2x512xf32>
    %81 = arith.addf %77, %80 : vector<2x512xf32>
    %c6_56 = arith.constant 6 : index
    %c0_57 = arith.constant 0 : index
    %82 = vector.load %arg6[%c6_56, %c0_57] : memref<8x512xf32, #tpu.memory_space<vmem>>, vector<2x512xf32>
    tpu.vector_store %arg6[%c6_56, %c0_57], %81 {strides = array<i32>} : memref<8x512xf32, #tpu.memory_space<vmem>>, vector<2x512xf32>,
    %c6_58 = arith.constant 6 : index
    %c0_59 = arith.constant 0 : index
    %83 = vector.load %arg6[%c6_58, %c0_59] : memref<8x512xf32, #tpu.memory_space<vmem>>, vector<1x512xf32>
    %cst_60 = arith.constant 1.000000e+01 : f32
    %84 = vector.broadcast %cst_60 : f32 to vector<1x512xf32>
    %85 = arith.cmpf oge, %83, %84 : vector<1x512xf32>
    %86 = arith.extui %85 : vector<1x512xi1> to vector<1x512xi32>
    %87 = arith.sitofp %86 : vector<1x512xi32> to vector<1x512xf32>
    %c6_61 = arith.constant 6 : index
    %c0_62 = arith.constant 0 : index
    %88 = vector.load %arg7[%c6_61, %c0_62] : memref<8x512xf32, #tpu.memory_space<vmem>>, vector<1x512xf32>
    tpu.vector_store %arg7[%c6_61, %c0_62], %87 {strides = array<i32>} : memref<8x512xf32, #tpu.memory_space<vmem>>, vector<1x512xf32>,
    %c7 = arith.constant 7 : index
    %c0_63 = arith.constant 0 : index
    %89 = vector.load %arg6[%c7, %c0_63] : memref<8x512xf32, #tpu.memory_space<vmem>>, vector<1x512xf32>
    %90 = vector.extract_strided_slice %2 {offsets = [1, 0], sizes = [1, 512], strides = [1, 1]} : vector<8x512xf32> to vector<1x512xf32>
    %91 = arith.mulf %90, %87 : vector<1x512xf32>
    %92 = arith.addf %89, %91 : vector<1x512xf32>
    %c7_64 = arith.constant 7 : index
    %c0_65 = arith.constant 0 : index
    %93 = vector.load %arg6[%c7_64, %c0_65] : memref<8x512xf32, #tpu.memory_space<vmem>>, vector<1x512xf32>
    tpu.vector_store %arg6[%c7_64, %c0_65], %92 {strides = array<i32>} : memref<8x512xf32, #tpu.memory_space<vmem>>, vector<1x512xf32>,
    %c7_66 = arith.constant 7 : index
    %c0_67 = arith.constant 0 : index
    %94 = vector.load %arg6[%c7_66, %c0_67] : memref<8x512xf32, #tpu.memory_space<vmem>>, vector<1x512xf32>
    %cst_68 = arith.constant 1.000000e+01 : f32
    %95 = vector.broadcast %cst_68 : f32 to vector<1x512xf32>
    %96 = arith.cmpf oge, %94, %95 : vector<1x512xf32>
    %97 = arith.extui %96 : vector<1x512xi1> to vector<1x512xi32>
    %98 = arith.sitofp %97 : vector<1x512xi32> to vector<1x512xf32>
    %c7_69 = arith.constant 7 : index
    %c0_70 = arith.constant 0 : index
    %99 = vector.load %arg7[%c7_69, %c0_70] : memref<8x512xf32, #tpu.memory_space<vmem>>, vector<1x512xf32>
    tpu.vector_store %arg7[%c7_69, %c0_70], %98 {strides = array<i32>} : memref<8x512xf32, #tpu.memory_space<vmem>>, vector<1x512xf32>,
    %c0_71 = arith.constant 0 : index
    %c0_72 = arith.constant 0 : index
    %100 = vector.load %arg7[%c0_71, %c0_72] : memref<8x512xf32, #tpu.memory_space<vmem>>, vector<8x512xf32>
    %c0_73 = arith.constant 0 : index
    %c0_74 = arith.constant 0 : index
    %101 = vector.load %arg4[%c0_73, %c0_74] : memref<512x128xf32, #tpu.memory_space<vmem>>, vector<512x128xf32>
    %cst_75 = arith.constant dense<0.000000e+00> : vector<8x128xf32>
    %102 = tpu.matmul %100, %101, %cst_75 {dimension_numbers = #tpu.dot_dimension_numbers<[1], [0], [0], [1], [0, 0, 1, 1], [], []>} : vector<8x512xf32>, vector<512x128xf32>, vector<8x128xf32> -> vector<8x128xf32>
    %c0_76 = arith.constant 0 : index
    %c0_77 = arith.constant 0 : index
    %103 = vector.load %arg1[%c0_76, %c0_77] : memref<8x8xf32, #tpu.memory_space<vmem>>, vector<8x8xf32>
    %cst_78 = arith.constant dense<0.000000e+00> : vector<8x128xf32>
    %104 = tpu.matmul %103, %102, %cst_78 {dimension_numbers = #tpu.dot_dimension_numbers<[1], [0], [0], [1], [0, 0, 1, 1], [], []>} : vector<8x8xf32>, vector<8x128xf32>, vector<8x128xf32> -> vector<8x128xf32>
    %c0_79 = arith.constant 0 : index
    %c0_80 = arith.constant 0 : index
    %105 = vector.load %arg8[%c0_79, %c0_80] : memref<8x128xf32, #tpu.memory_space<vmem>>, vector<8x128xf32>
    tpu.vector_store %arg8[%c0_79, %c0_80], %104 {strides = array<i32>} : memref<8x128xf32, #tpu.memory_space<vmem>>, vector<8x128xf32>,
    %c0_81 = arith.constant 0 : index
    %c0_82 = arith.constant 0 : index
    %106 = vector.load %arg8[%c0_81, %c0_82] : memref<8x128xf32, #tpu.memory_space<vmem>>, vector<1x128xf32>
    %cst_83 = arith.constant 1.000000e+01 : f32
    %107 = vector.broadcast %cst_83 : f32 to vector<1x128xf32>
    %108 = arith.cmpf oge, %106, %107 : vector<1x128xf32>
    %109 = arith.extui %108 : vector<1x128xi1> to vector<1x128xi32>
    %110 = arith.sitofp %109 : vector<1x128xi32> to vector<1x128xf32>
    %c0_84 = arith.constant 0 : index
    %c0_85 = arith.constant 0 : index
    %c0_86 = arith.constant 0 : index
    %111 = vector.load %arg5[%c0_84, %c0_85, %c0_86] : memref<1x8x128xf32, #tpu.memory_space<vmem>>, vector<1x1x128xf32>
    %112 = vector.shape_cast %111 : vector<1x1x128xf32> to vector<1x128xf32>
    %113 = vector.shape_cast %110 : vector<1x128xf32> to vector<1x1x128xf32>
    tpu.vector_store %arg5[%c0_84, %c0_85, %c0_86], %113 {strides = array<i32>} : memref<1x8x128xf32, #tpu.memory_space<vmem>>, vector<1x1x128xf32>,
    %c1_87 = arith.constant 1 : index
    %c0_88 = arith.constant 0 : index
    %114 = vector.load %arg8[%c1_87, %c0_88] : memref<8x128xf32, #tpu.memory_space<vmem>>, vector<7x128xf32>
    %115 = vector.extract_strided_slice %5 {offsets = [1, 0], sizes = [7, 128], strides = [1, 1]} : vector<8x128xf32> to vector<7x128xf32>
    %116 = vector.broadcast %110 : vector<1x128xf32> to vector<7x128xf32>
    %117 = arith.mulf %115, %116 : vector<7x128xf32>
    %118 = arith.addf %114, %117 : vector<7x128xf32>
    %c1_89 = arith.constant 1 : index
    %c0_90 = arith.constant 0 : index
    %119 = vector.load %arg8[%c1_89, %c0_90] : memref<8x128xf32, #tpu.memory_space<vmem>>, vector<7x128xf32>
    tpu.vector_store %arg8[%c1_89, %c0_90], %118 {strides = array<i32>} : memref<8x128xf32, #tpu.memory_space<vmem>>, vector<7x128xf32>,
    %c1_91 = arith.constant 1 : index
    %c0_92 = arith.constant 0 : index
    %120 = vector.load %arg8[%c1_91, %c0_92] : memref<8x128xf32, #tpu.memory_space<vmem>>, vector<1x128xf32>
    %cst_93 = arith.constant 1.000000e+01 : f32
    %121 = vector.broadcast %cst_93 : f32 to vector<1x128xf32>
    %122 = arith.cmpf oge, %120, %121 : vector<1x128xf32>
    %123 = arith.extui %122 : vector<1x128xi1> to vector<1x128xi32>
    %124 = arith.sitofp %123 : vector<1x128xi32> to vector<1x128xf32>
    %c0_94 = arith.constant 0 : index
    %c1_95 = arith.constant 1 : index
    %c0_96 = arith.constant 0 : index
    %125 = vector.load %arg5[%c0_94, %c1_95, %c0_96] : memref<1x8x128xf32, #tpu.memory_space<vmem>>, vector<1x1x128xf32>
    %126 = vector.shape_cast %125 : vector<1x1x128xf32> to vector<1x128xf32>
    %127 = vector.shape_cast %124 : vector<1x128xf32> to vector<1x1x128xf32>
    tpu.vector_store %arg5[%c0_94, %c1_95, %c0_96], %127 {strides = array<i32>} : memref<1x8x128xf32, #tpu.memory_space<vmem>>, vector<1x1x128xf32>,
    %c2_97 = arith.constant 2 : index
    %c0_98 = arith.constant 0 : index
    %128 = vector.load %arg8[%c2_97, %c0_98] : memref<8x128xf32, #tpu.memory_space<vmem>>, vector<6x128xf32>
    %129 = vector.extract_strided_slice %5 {offsets = [1, 0], sizes = [6, 128], strides = [1, 1]} : vector<8x128xf32> to vector<6x128xf32>
    %130 = vector.broadcast %124 : vector<1x128xf32> to vector<6x128xf32>
    %131 = arith.mulf %129, %130 : vector<6x128xf32>
    %132 = arith.addf %128, %131 : vector<6x128xf32>
    %c2_99 = arith.constant 2 : index
    %c0_100 = arith.constant 0 : index
    %133 = vector.load %arg8[%c2_99, %c0_100] : memref<8x128xf32, #tpu.memory_space<vmem>>, vector<6x128xf32>
    tpu.vector_store %arg8[%c2_99, %c0_100], %132 {strides = array<i32>} : memref<8x128xf32, #tpu.memory_space<vmem>>, vector<6x128xf32>,
    %c2_101 = arith.constant 2 : index
    %c0_102 = arith.constant 0 : index
    %134 = vector.load %arg8[%c2_101, %c0_102] : memref<8x128xf32, #tpu.memory_space<vmem>>, vector<1x128xf32>
    %cst_103 = arith.constant 1.000000e+01 : f32
    %135 = vector.broadcast %cst_103 : f32 to vector<1x128xf32>
    %136 = arith.cmpf oge, %134, %135 : vector<1x128xf32>
    %137 = arith.extui %136 : vector<1x128xi1> to vector<1x128xi32>
    %138 = arith.sitofp %137 : vector<1x128xi32> to vector<1x128xf32>
    %c0_104 = arith.constant 0 : index
    %c2_105 = arith.constant 2 : index
    %c0_106 = arith.constant 0 : index
    %139 = vector.load %arg5[%c0_104, %c2_105, %c0_106] : memref<1x8x128xf32, #tpu.memory_space<vmem>>, vector<1x1x128xf32>
    %140 = vector.shape_cast %139 : vector<1x1x128xf32> to vector<1x128xf32>
    %141 = vector.shape_cast %138 : vector<1x128xf32> to vector<1x1x128xf32>
    tpu.vector_store %arg5[%c0_104, %c2_105, %c0_106], %141 {strides = array<i32>} : memref<1x8x128xf32, #tpu.memory_space<vmem>>, vector<1x1x128xf32>,
    %c3_107 = arith.constant 3 : index
    %c0_108 = arith.constant 0 : index
    %142 = vector.load %arg8[%c3_107, %c0_108] : memref<8x128xf32, #tpu.memory_space<vmem>>, vector<5x128xf32>
    %143 = vector.extract_strided_slice %5 {offsets = [1, 0], sizes = [5, 128], strides = [1, 1]} : vector<8x128xf32> to vector<5x128xf32>
    %144 = vector.broadcast %138 : vector<1x128xf32> to vector<5x128xf32>
    %145 = arith.mulf %143, %144 : vector<5x128xf32>
    %146 = arith.addf %142, %145 : vector<5x128xf32>
    %c3_109 = arith.constant 3 : index
    %c0_110 = arith.constant 0 : index
    %147 = vector.load %arg8[%c3_109, %c0_110] : memref<8x128xf32, #tpu.memory_space<vmem>>, vector<5x128xf32>
    tpu.vector_store %arg8[%c3_109, %c0_110], %146 {strides = array<i32>} : memref<8x128xf32, #tpu.memory_space<vmem>>, vector<5x128xf32>,
    %c3_111 = arith.constant 3 : index
    %c0_112 = arith.constant 0 : index
    %148 = vector.load %arg8[%c3_111, %c0_112] : memref<8x128xf32, #tpu.memory_space<vmem>>, vector<1x128xf32>
    %cst_113 = arith.constant 1.000000e+01 : f32
    %149 = vector.broadcast %cst_113 : f32 to vector<1x128xf32>
    %150 = arith.cmpf oge, %148, %149 : vector<1x128xf32>
    %151 = arith.extui %150 : vector<1x128xi1> to vector<1x128xi32>
    %152 = arith.sitofp %151 : vector<1x128xi32> to vector<1x128xf32>
    %c0_114 = arith.constant 0 : index
    %c3_115 = arith.constant 3 : index
    %c0_116 = arith.constant 0 : index
    %153 = vector.load %arg5[%c0_114, %c3_115, %c0_116] : memref<1x8x128xf32, #tpu.memory_space<vmem>>, vector<1x1x128xf32>
    %154 = vector.shape_cast %153 : vector<1x1x128xf32> to vector<1x128xf32>
    %155 = vector.shape_cast %152 : vector<1x128xf32> to vector<1x1x128xf32>
    tpu.vector_store %arg5[%c0_114, %c3_115, %c0_116], %155 {strides = array<i32>} : memref<1x8x128xf32, #tpu.memory_space<vmem>>, vector<1x1x128xf32>,
    %c4_117 = arith.constant 4 : index
    %c0_118 = arith.constant 0 : index
    %156 = vector.load %arg8[%c4_117, %c0_118] : memref<8x128xf32, #tpu.memory_space<vmem>>, vector<4x128xf32>
    %157 = vector.extract_strided_slice %5 {offsets = [1, 0], sizes = [4, 128], strides = [1, 1]} : vector<8x128xf32> to vector<4x128xf32>
    %158 = vector.broadcast %152 : vector<1x128xf32> to vector<4x128xf32>
    %159 = arith.mulf %157, %158 : vector<4x128xf32>
    %160 = arith.addf %156, %159 : vector<4x128xf32>
    %c4_119 = arith.constant 4 : index
    %c0_120 = arith.constant 0 : index
    %161 = vector.load %arg8[%c4_119, %c0_120] : memref<8x128xf32, #tpu.memory_space<vmem>>, vector<4x128xf32>
    tpu.vector_store %arg8[%c4_119, %c0_120], %160 {strides = array<i32>} : memref<8x128xf32, #tpu.memory_space<vmem>>, vector<4x128xf32>,
    %c4_121 = arith.constant 4 : index
    %c0_122 = arith.constant 0 : index
    %162 = vector.load %arg8[%c4_121, %c0_122] : memref<8x128xf32, #tpu.memory_space<vmem>>, vector<1x128xf32>
    %cst_123 = arith.constant 1.000000e+01 : f32
    %163 = vector.broadcast %cst_123 : f32 to vector<1x128xf32>
    %164 = arith.cmpf oge, %162, %163 : vector<1x128xf32>
    %165 = arith.extui %164 : vector<1x128xi1> to vector<1x128xi32>
    %166 = arith.sitofp %165 : vector<1x128xi32> to vector<1x128xf32>
    %c0_124 = arith.constant 0 : index
    %c4_125 = arith.constant 4 : index
    %c0_126 = arith.constant 0 : index
    %167 = vector.load %arg5[%c0_124, %c4_125, %c0_126] : memref<1x8x128xf32, #tpu.memory_space<vmem>>, vector<1x1x128xf32>
    %168 = vector.shape_cast %167 : vector<1x1x128xf32> to vector<1x128xf32>
    %169 = vector.shape_cast %166 : vector<1x128xf32> to vector<1x1x128xf32>
    tpu.vector_store %arg5[%c0_124, %c4_125, %c0_126], %169 {strides = array<i32>} : memref<1x8x128xf32, #tpu.memory_space<vmem>>, vector<1x1x128xf32>,
    %c5_127 = arith.constant 5 : index
    %c0_128 = arith.constant 0 : index
    %170 = vector.load %arg8[%c5_127, %c0_128] : memref<8x128xf32, #tpu.memory_space<vmem>>, vector<3x128xf32>
    %171 = vector.extract_strided_slice %5 {offsets = [1, 0], sizes = [3, 128], strides = [1, 1]} : vector<8x128xf32> to vector<3x128xf32>
    %172 = vector.broadcast %166 : vector<1x128xf32> to vector<3x128xf32>
    %173 = arith.mulf %171, %172 : vector<3x128xf32>
    %174 = arith.addf %170, %173 : vector<3x128xf32>
    %c5_129 = arith.constant 5 : index
    %c0_130 = arith.constant 0 : index
    %175 = vector.load %arg8[%c5_129, %c0_130] : memref<8x128xf32, #tpu.memory_space<vmem>>, vector<3x128xf32>
    tpu.vector_store %arg8[%c5_129, %c0_130], %174 {strides = array<i32>} : memref<8x128xf32, #tpu.memory_space<vmem>>, vector<3x128xf32>,
    %c5_131 = arith.constant 5 : index
    %c0_132 = arith.constant 0 : index
    %176 = vector.load %arg8[%c5_131, %c0_132] : memref<8x128xf32, #tpu.memory_space<vmem>>, vector<1x128xf32>
    %cst_133 = arith.constant 1.000000e+01 : f32
    %177 = vector.broadcast %cst_133 : f32 to vector<1x128xf32>
    %178 = arith.cmpf oge, %176, %177 : vector<1x128xf32>
    %179 = arith.extui %178 : vector<1x128xi1> to vector<1x128xi32>
    %180 = arith.sitofp %179 : vector<1x128xi32> to vector<1x128xf32>
    %c0_134 = arith.constant 0 : index
    %c5_135 = arith.constant 5 : index
    %c0_136 = arith.constant 0 : index
    %181 = vector.load %arg5[%c0_134, %c5_135, %c0_136] : memref<1x8x128xf32, #tpu.memory_space<vmem>>, vector<1x1x128xf32>
    %182 = vector.shape_cast %181 : vector<1x1x128xf32> to vector<1x128xf32>
    %183 = vector.shape_cast %180 : vector<1x128xf32> to vector<1x1x128xf32>
    tpu.vector_store %arg5[%c0_134, %c5_135, %c0_136], %183 {strides = array<i32>} : memref<1x8x128xf32, #tpu.memory_space<vmem>>, vector<1x1x128xf32>,
    %c6_137 = arith.constant 6 : index
    %c0_138 = arith.constant 0 : index
    %184 = vector.load %arg8[%c6_137, %c0_138] : memref<8x128xf32, #tpu.memory_space<vmem>>, vector<2x128xf32>
    %185 = vector.extract_strided_slice %5 {offsets = [1, 0], sizes = [2, 128], strides = [1, 1]} : vector<8x128xf32> to vector<2x128xf32>
    %186 = vector.broadcast %180 : vector<1x128xf32> to vector<2x128xf32>
    %187 = arith.mulf %185, %186 : vector<2x128xf32>
    %188 = arith.addf %184, %187 : vector<2x128xf32>
    %c6_139 = arith.constant 6 : index
    %c0_140 = arith.constant 0 : index
    %189 = vector.load %arg8[%c6_139, %c0_140] : memref<8x128xf32, #tpu.memory_space<vmem>>, vector<2x128xf32>
    tpu.vector_store %arg8[%c6_139, %c0_140], %188 {strides = array<i32>} : memref<8x128xf32, #tpu.memory_space<vmem>>, vector<2x128xf32>,
    %c6_141 = arith.constant 6 : index
    %c0_142 = arith.constant 0 : index
    %190 = vector.load %arg8[%c6_141, %c0_142] : memref<8x128xf32, #tpu.memory_space<vmem>>, vector<1x128xf32>
    %cst_143 = arith.constant 1.000000e+01 : f32
    %191 = vector.broadcast %cst_143 : f32 to vector<1x128xf32>
    %192 = arith.cmpf oge, %190, %191 : vector<1x128xf32>
    %193 = arith.extui %192 : vector<1x128xi1> to vector<1x128xi32>
    %194 = arith.sitofp %193 : vector<1x128xi32> to vector<1x128xf32>
    %c0_144 = arith.constant 0 : index
    %c6_145 = arith.constant 6 : index
    %c0_146 = arith.constant 0 : index
    %195 = vector.load %arg5[%c0_144, %c6_145, %c0_146] : memref<1x8x128xf32, #tpu.memory_space<vmem>>, vector<1x1x128xf32>
    %196 = vector.shape_cast %195 : vector<1x1x128xf32> to vector<1x128xf32>
    %197 = vector.shape_cast %194 : vector<1x128xf32> to vector<1x1x128xf32>
    tpu.vector_store %arg5[%c0_144, %c6_145, %c0_146], %197 {strides = array<i32>} : memref<1x8x128xf32, #tpu.memory_space<vmem>>, vector<1x1x128xf32>,
    %c7_147 = arith.constant 7 : index
    %c0_148 = arith.constant 0 : index
    %198 = vector.load %arg8[%c7_147, %c0_148] : memref<8x128xf32, #tpu.memory_space<vmem>>, vector<1x128xf32>
    %199 = vector.extract_strided_slice %5 {offsets = [1, 0], sizes = [1, 128], strides = [1, 1]} : vector<8x128xf32> to vector<1x128xf32>
    %200 = arith.mulf %199, %194 : vector<1x128xf32>
    %201 = arith.addf %198, %200 : vector<1x128xf32>
    %c7_149 = arith.constant 7 : index
    %c0_150 = arith.constant 0 : index
    %202 = vector.load %arg8[%c7_149, %c0_150] : memref<8x128xf32, #tpu.memory_space<vmem>>, vector<1x128xf32>
    tpu.vector_store %arg8[%c7_149, %c0_150], %201 {strides = array<i32>} : memref<8x128xf32, #tpu.memory_space<vmem>>, vector<1x128xf32>,
    %c7_151 = arith.constant 7 : index
    %c0_152 = arith.constant 0 : index
    %203 = vector.load %arg8[%c7_151, %c0_152] : memref<8x128xf32, #tpu.memory_space<vmem>>, vector<1x128xf32>
    %cst_153 = arith.constant 1.000000e+01 : f32
    %204 = vector.broadcast %cst_153 : f32 to vector<1x128xf32>
    %205 = arith.cmpf oge, %203, %204 : vector<1x128xf32>
    %206 = arith.extui %205 : vector<1x128xi1> to vector<1x128xi32>
    %207 = arith.sitofp %206 : vector<1x128xi32> to vector<1x128xf32>
    %c0_154 = arith.constant 0 : index
    %c7_155 = arith.constant 7 : index
    %c0_156 = arith.constant 0 : index
    %208 = vector.load %arg5[%c0_154, %c7_155, %c0_156] : memref<1x8x128xf32, #tpu.memory_space<vmem>>, vector<1x1x128xf32>
    %209 = vector.shape_cast %208 : vector<1x1x128xf32> to vector<1x128xf32>
    %210 = vector.shape_cast %207 : vector<1x128xf32> to vector<1x1x128xf32>
    tpu.vector_store %arg5[%c0_154, %c7_155, %c0_156], %210 {strides = array<i32>} : memref<1x8x128xf32, #tpu.memory_space<vmem>>, vector<1x1x128xf32>,
    return
  }
  func.func @transform_0(%arg0: i32) -> (i32, i32) {
    %c0_i32 = arith.constant 0 : i32
    %c0_i32_0 = arith.constant 0 : i32
    %c0_i32_1 = arith.constant 0 : i32
    return %c0_i32, %c0_i32_0 : i32, i32
  }
  func.func @transform_1(%arg0: i32) -> (i32, i32) {
    %c0_i32 = arith.constant 0 : i32
    %c0_i32_0 = arith.constant 0 : i32
    %c0_i32_1 = arith.constant 0 : i32
    return %c0_i32, %c0_i32_0 : i32, i32
  }
  func.func @transform_2(%arg0: i32) -> (i32, i32, i32) {
    %c0_i32 = arith.constant 0 : i32
    %c0_i32_0 = arith.constant 0 : i32
    %c0_i32_1 = arith.constant 0 : i32
    return %arg0, %c0_i32, %c0_i32_0 : i32, i32, i32
  }
  func.func @transform_3(%arg0: i32) -> (i32, i32) {
    %c0_i32 = arith.constant 0 : i32
    %c0_i32_0 = arith.constant 0 : i32
    %c0_i32_1 = arith.constant 0 : i32
    return %c0_i32, %c0_i32_0 : i32, i32
  }
  func.func @transform_4(%arg0: i32) -> (i32, i32, i32) {
    %c0_i32 = arith.constant 0 : i32
    %c0_i32_0 = arith.constant 0 : i32
    %c0_i32_1 = arith.constant 0 : i32
    return %arg0, %c0_i32, %c0_i32_0 : i32, i32, i32
  }
}

</mosaic_0001>

<llo_original>
// kernel: network_forward.2
$region0: #{network_forward.2}
  #allocation0 [shape = 'u32[]', space=smem, size = 0x4, offset = 0x4, fixed_abs, tag = 'smem constant byte address 0x4 - core index']
  #allocation1 [shape = 'u32[144,128]{1,0:T(1,128)}', space=vmem, size = 0x12000, scoped, tag = 'internal scratch']
  %s0 = inlined_call_operand.vmem [shape: bf16[16,2048], index: 0, kind: input, shape index: {}]
  %s1 = inlined_call_operand.hbm [shape: s8[2048,512], index: 1, kind: input, shape index: {}]
  %s2 = inlined_call_operand.vmem [shape: f32[1,512], index: 2, kind: input, shape index: {}]
  %s3 = inlined_call_operand.vmem [shape: f32[16,512], index: 3, kind: output, shape index: {}]
  %s4 = sld [smem:[#allocation0]]
  $region76: #{network_forward.2} parent=0
    _
  %s6 = ssub.s32 1, %s4
  %s7 = scalar_select 0, %s6, %s4
  $region1: #{network_forward.2} parent=0
    #allocation2 [shape = 'u8[1048576]{0}', space=vmem, size = 0x100000, scoped, tag = 'input window, operand 1']
    #allocation3 [shape = 's32[2]{0}', space=sflag, size = 0x8, scoped, tag = 'scoped memory for network_forward.2']
    #allocation4 [shape = 'u8[32768]{0}', space=vmem, size = 0x8000, scoped, tag = 'output window, operand 0']
    %8 = vsyncpa [#allocation3], 0
    %s9 = scalar_lea.sflag [#allocation3], 1
    %10 = vsyncpa %s9, 0
    loop: start=0, step=1, limit=4
    $region2: #{network_forward.2} parent=1 // loop_pre_header
      _
    $region3: #{network_forward.2} parent=1 // loop_header
      %s12 = sphi 0, %s16
      %p13 = scmp.ge.s32.totalorder %s12, 4
      %s19 = sphi 0, %s31
      %s20 = sphi 0, %s27
      %s21 = sphi 0, %s19
      %s22 = sphi 0, %s20
      %s23 = sphi 0, %s21
      %s24 = sphi 0, %s22
      %s34 = sphi 0, %s36
      %s37 = sphi 0, %s34
      %s38 = sphi 0, %s37
      %s54 = sphi 0, %s38
      %s62 = sphi 0, %s64
      %s65 = sphi 0, %s62
      %s66 = sphi 0, %s65
      %s82 = sphi 0, %s66
      %s88 = sphi 0, %s90
      %s91 = sphi 0, %s88
      %s92 = sphi 0, %s91
      %s108 = sphi 0, %s92
      %s114 = sphi 0, %s116
      %s117 = sphi 0, %s114
      %s118 = sphi 0, %s117
      %s134 = sphi 0, %s118
    $region4: #{network_forward.2} parent=1 // loop_header_branch
      %15 = sbr.rel (%p13) target = $region8
    $region5: #{network_forward.2} parent=1 // loop_body
      %s17 = ssub.s32 %s12, 1
      %s18 = ssub.s32 %s12, 2
      %s25 = sadd.s32 1, %s20
      %p26 = scmp.ge.s32.totalorder %s25, 1
      %s27 = scalar_select %p26, 0, %s25
      %s28 = sadd.s32 1, %s19
      %s29 = scalar_select %p26, %s28, %s19
      %p30 = scmp.ge.s32.totalorder %s29, 2
      %s31 = scalar_select %p30, 0, %s29
      %s32 = ssub.s32 %s20, %s27
      %p33 = scmp.eq.s32.totalorder %s32, 0
      %s35 = sadd.s32 %s34, 1
      %s36 = scalar_select %p33, %s34, %s35
      %p39 = pneg %p33
      %p40 = scmp.eq.s32.totalorder %s12, 1
      %p41 = por %p39, %p40
      %p42 = scmp.ne.s32.totalorder %s34, %s37
      %p43 = scmp.eq.s32.totalorder %s12, 0
      %p44 = por %p42, %p43
      %p45 = scmp.ne.s32.totalorder %s34, %s37
      %p46 = scmp.eq.s32.totalorder %s17, 1
      %p47 = por %p45, %p46
      %p48 = scmp.ne.s32.totalorder %s37, %s38
      %p49 = scmp.eq.s32.totalorder %s17, 0
      %p50 = por %p48, %p49
      %p51 = scmp.ne.s32.totalorder %s37, %s38
      %p52 = scmp.eq.s32.totalorder %s18, 1
      %p53 = por %p51, %p52
      %p55 = scmp.ne.s32.totalorder %s38, %s54
      %p56 = scmp.eq.s32.totalorder %s18, 0
      %p57 = por %p55, %p56
      %s58 = ssub.s32 %s20, %s27
      %s59 = ssub.s32 %s19, %s31
      %s60 = sor.u32 %s58, %s59
      %p61 = scmp.eq.s32.totalorder %s60, 0
      %s63 = sadd.s32 %s62, 1
      %s64 = scalar_select %p61, %s62, %s63
      %p67 = pneg %p61
      %p68 = scmp.eq.s32.totalorder %s12, 1
      %p69 = por %p67, %p68
      %p70 = scmp.ne.s32.totalorder %s62, %s65
      %p71 = scmp.eq.s32.totalorder %s12, 0
      %p72 = por %p70, %p71
      %p73 = scmp.ne.s32.totalorder %s62, %s65
      %p74 = scmp.eq.s32.totalorder %s17, 1
      %p75 = por %p73, %p74
      %p76 = scmp.ne.s32.totalorder %s65, %s66
      %p77 = scmp.eq.s32.totalorder %s17, 0
      %p78 = por %p76, %p77
      %p79 = scmp.ne.s32.totalorder %s65, %s66
      %p80 = scmp.eq.s32.totalorder %s18, 1
      %p81 = por %p79, %p80
      %p83 = scmp.ne.s32.totalorder %s66, %s82
      %p84 = scmp.eq.s32.totalorder %s18, 0
      %p85 = por %p83, %p84
      %s86 = ssub.s32 %s19, %s31
      %p87 = scmp.eq.s32.totalorder %s86, 0
      %s89 = sadd.s32 %s88, 1
      %s90 = scalar_select %p87, %s88, %s89
      %p93 = pneg %p87
      %p94 = scmp.eq.s32.totalorder %s12, 1
      %p95 = por %p93, %p94
      %p96 = scmp.ne.s32.totalorder %s88, %s91
      %p97 = scmp.eq.s32.totalorder %s12, 0
      %p98 = por %p96, %p97
      %p99 = scmp.ne.s32.totalorder %s88, %s91
      %p100 = scmp.eq.s32.totalorder %s17, 1
      %p101 = por %p99, %p100
      %p102 = scmp.ne.s32.totalorder %s91, %s92
      %p103 = scmp.eq.s32.totalorder %s17, 0
      %p104 = por %p102, %p103
      %p105 = scmp.ne.s32.totalorder %s91, %s92
      %p106 = scmp.eq.s32.totalorder %s18, 1
      %p107 = por %p105, %p106
      %p109 = scmp.ne.s32.totalorder %s92, %s108
      %p110 = scmp.eq.s32.totalorder %s18, 0
      %p111 = por %p109, %p110
      %s112 = ssub.s32 %s19, %s31
      %p113 = scmp.eq.s32.totalorder %s112, 0
      %s115 = sadd.s32 %s114, 1
      %s116 = scalar_select %p113, %s114, %s115
      %p119 = pneg %p113
      %p120 = scmp.eq.s32.totalorder %s12, 1
      %p121 = por %p119, %p120
      %p122 = scmp.ne.s32.totalorder %s114, %s117
      %p123 = scmp.eq.s32.totalorder %s12, 0
      %p124 = por %p122, %p123
      %p125 = scmp.ne.s32.totalorder %s114, %s117
      %p126 = scmp.eq.s32.totalorder %s17, 1
      %p127 = por %p125, %p126
      %p128 = scmp.ne.s32.totalorder %s117, %s118
      %p129 = scmp.eq.s32.totalorder %s17, 0
      %p130 = por %p128, %p129
      %p131 = scmp.ne.s32.totalorder %s117, %s118
      %p132 = scmp.eq.s32.totalorder %s18, 1
      %p133 = por %p131, %p132
      %p135 = scmp.ne.s32.totalorder %s118, %s134
      %p136 = scmp.eq.s32.totalorder %s18, 0
      %p137 = por %p135, %p136
      %p138 = scmp.le.s32.totalorder 1, %s12
      %p139 = scmp.lt.s32.totalorder %s12, 3
      %p140 = pnand %p138, %p139
      %p141 = pneg %p140
      // Predicated region
      $region9: #{network_forward.2} parent=5 // pred_check
        _
      $region10: #{network_forward.2} parent=5 // pred_check_branch
        %143 = sbr.rel (%p140) target = $region12
      $region11: #{network_forward.2} parent=5 // pred_region
        %s144 = ssub.s32 %s12, 1
        // Predicated region
        $region13: #{network_forward.2} parent=11 // pred_check
          %p145 = pneg %p50
        $region14: #{network_forward.2} parent=11 // pred_check_branch
          %147 = sbr.rel (%p145) target = $region16
        $region15: #{network_forward.2} parent=11 // pred_region
          %s148 = smul.u32 16, %s22
          %p149 = scmp.lt.s32.totalorder %s148, 15
          %s150 = scalar_select %p149, %s148, 15
          %s151 = smul.addr %s150, 4
          %s152 = scalar_lea.vmem %s0, %s151
          %s153 = smul.u32 16, %s22
        $region16: #{network_forward.2} parent=11 // pred_fallthru
          _
      $region12: #{network_forward.2} parent=5 // pred_fallthru
        _
      %p154 = scmp.lt.s32.totalorder %s12, 2
      // Predicated region
      $region17: #{network_forward.2} parent=5 // pred_check
        %p155 = pneg %p154
      $region18: #{network_forward.2} parent=5 // pred_check_branch
        %157 = sbr.rel (%p155) target = $region20
      $region19: #{network_forward.2} parent=5 // pred_region
        // Predicated region
        $region21: #{network_forward.2} parent=19 // pred_check
          %p158 = pneg %p72
        $region22: #{network_forward.2} parent=19 // pred_check_branch
          %160 = sbr.rel (%p158) target = $region24
        $region23: #{network_forward.2} parent=19 // pred_region
          %s161 = sand.u32 %s62, 1
          %s162 = scalar_lea.sflag [#allocation3], %s161
          %s163 = sand.u32 %s62, 1
          %s164 = smul.addr %s163, 1024
          %s165 = scalar_lea.vmem [#allocation2], %s164
          %s166 = smul.u32 64, %s20
          %s167 = smul.u32 2, %s19
          %s169 = ssub.s32 16384, 16384
          %170 = vsyncadd %s162, %s169
          %s171 = smul.addr %s166, 4
          %s172 = sadd.s32 %s167, %s171
          %s173 = smul.addr %s172, 128
          %s174 = scalar_lea.hbm %s1, %s173
          %s175 = sshll.u32 %s165, 4
          %s176 = int_to_ptr.vmem [resolvable:$true] %s175
          %181 = dma.hbm_to_vmem [thread:$0]  %s174, 16384, %s176, %s162, 512, 256, 16
        $region24: #{network_forward.2} parent=19 // pred_fallthru
          _
        // Predicated region
        $region25: #{network_forward.2} parent=19 // pred_check
          %p182 = pneg %p98
        $region26: #{network_forward.2} parent=19 // pred_check_branch
          %184 = sbr.rel (%p182) target = $region28
        $region27: #{network_forward.2} parent=19 // pred_region
          %s185 = smul.u32 2, %s19
          %p186 = scmp.lt.s32.totalorder %s185, 3
          %s187 = scalar_select %p186, %s185, 3
          %s188 = scalar_lea.vmem %s2, %s187
          %s189 = smul.u32 2, %s19
        $region28: #{network_forward.2} parent=19 // pred_fallthru
          _
      $region20: #{network_forward.2} parent=5 // pred_fallthru
        _
      %p190 = scmp.le.s32.totalorder 1, %s12
      %p191 = scmp.lt.s32.totalorder %s12, 3
      %p192 = pnand %p190, %p191
      %p193 = pneg %p192
      // Predicated region
      $region29: #{network_forward.2} parent=5 // pred_check
        _
      $region30: #{network_forward.2} parent=5 // pred_check_branch
        %195 = sbr.rel (%p192) target = $region32
      $region31: #{network_forward.2} parent=5 // pred_region
        %s196 = ssub.s32 %s12, 1
        %s197 = sand.u32 %s65, 1
        %s198 = scalar_lea.sflag [#allocation3], %s197
        %s199 = sand.u32 %s65, 1
        %s200 = smul.addr %s199, 1024
        %s201 = scalar_lea.vmem [#allocation2], %s200
        // Predicated region
        $region33: #{network_forward.2} parent=31 // pred_check
          %p202 = pneg %p78
        $region34: #{network_forward.2} parent=31 // pred_check_branch
          %204 = sbr.rel (%p202) target = $region36
        $region35: #{network_forward.2} parent=31 // pred_region
          %205 = dma.done %s198, 16384
        $region36: #{network_forward.2} parent=31 // pred_fallthru
          _
        %s206 = smul.u32 16, %s22
        %p207 = scmp.lt.s32.totalorder %s206, 15
        %s208 = scalar_select %p207, %s206, 15
        %s209 = smul.addr %s208, 4
        %s210 = scalar_lea.vmem %s0, %s209
        %p211 = pneg %p50
        %p212 = pneg %p47
        %s213 = sand.u32 %s65, 1
        %s214 = scalar_lea.sflag [#allocation3], %s213
        %s215 = sand.u32 %s65, 1
        %s216 = smul.addr %s215, 1024
        %s217 = scalar_lea.vmem [#allocation2], %s216
        %p218 = pneg %p78
        %p219 = pneg %p75
        %s220 = smul.u32 2, %s21
        %p221 = scmp.lt.s32.totalorder %s220, 3
        %s222 = scalar_select %p221, %s220, 3
        %s223 = scalar_lea.vmem %s2, %s222
        %p224 = pneg %p104
        %p225 = pneg %p101
        %p226 = pneg %p130
        %p227 = pneg %p127
        %s228 = sand.u32 %s117, 1
        %s229 = sand.u32 %s117, 1
        %s230 = smul.addr %s229, 32
        %s231 = scalar_lea.vmem [#allocation4], %s230
        %s232 = smul.u32 16, %s22
        %p233 = scmp.lt.s32.totalorder %s232, 15
        %s234 = scalar_select %p233, %s232, 15
        %s235 = smul.addr %s234, 4
        %s236 = scalar_lea.vmem %s0, %s235
        %s237 = smul.u32 16, %s22
        %s238 = smul.u32 64, %s22
        %s239 = smul.u32 2, %s21
        %s240 = smul.u32 2, %s21
        %p241 = scmp.lt.s32.totalorder %s240, 3
        %s242 = scalar_select %p241, %s240, 3
        %s243 = scalar_lea.vmem %s2, %s242
        %s244 = smul.u32 2, %s21
        %s245 = smul.u32 2, %s21
        %p246 = scmp.eq.s32.totalorder %s22, 0
        // Predicated region
        $region37: #{network_forward.2} parent=31 // pred_check
          %p247 = pneg %p246
        $region38: #{network_forward.2} parent=31 // pred_check_branch
          %249 = sbr.rel (%p247) target = $region40
        $region39: #{network_forward.2} parent=31 // pred_region
          %250 = vst [vmem:[%s231] sm:$0xff] 0.0
          %251 = vst [vmem:[%s231 + $0x8] sm:$0xff] 0.0
          %252 = vst [vmem:[%s231 + $0x10] sm:$0xff] 0.0
          %253 = vst [vmem:[%s231 + $0x18] sm:$0xff] 0.0
        $region40: #{network_forward.2} parent=31 // pred_fallthru
          _
        %v254 = vld [vmem:[%s201] sm:$0xff]
        %v255 = vld [vmem:[%s201 + $0x8] sm:$0xff]
        %v256 = vld [vmem:[%s201 + $0x10] sm:$0xff]
        %v257 = vld [vmem:[%s201 + $0x18] sm:$0xff]
        %v258 = vld [vmem:[%s201 + $0x20] sm:$0xff]
        %v259 = vld [vmem:[%s201 + $0x28] sm:$0xff]
        %v260 = vld [vmem:[%s201 + $0x30] sm:$0xff]
        %v261 = vld [vmem:[%s201 + $0x38] sm:$0xff]
        %v262 = vld [vmem:[%s201 + $0x40] sm:$0xff]
        %v263 = vld [vmem:[%s201 + $0x48] sm:$0xff]
        %v264 = vld [vmem:[%s201 + $0x50] sm:$0xff]
        %v265 = vld [vmem:[%s201 + $0x58] sm:$0xff]
        %v266 = vld [vmem:[%s201 + $0x60] sm:$0xff]
        %v267 = vld [vmem:[%s201 + $0x68] sm:$0xff]
        %v268 = vld [vmem:[%s201 + $0x70] sm:$0xff]
        %v269 = vld [vmem:[%s201 + $0x78] sm:$0xff]
        %v270 = vld [vmem:[%s201 + $0x80] sm:$0xff]
        %v271 = vld [vmem:[%s201 + $0x88] sm:$0xff]
        %v272 = vld [vmem:[%s201 + $0x90] sm:$0xff]
        %v273 = vld [vmem:[%s201 + $0x98] sm:$0xff]
        %v274 = vld [vmem:[%s201 + $0xa0] sm:$0xff]
        %v275 = vld [vmem:[%s201 + $0xa8] sm:$0xff]
        %v276 = vld [vmem:[%s201 + $0xb0] sm:$0xff]
        %v277 = vld [vmem:[%s201 + $0xb8] sm:$0xff]
        %v278 = vld [vmem:[%s201 + $0xc0] sm:$0xff]
        %v279 = vld [vmem:[%s201 + $0xc8] sm:$0xff]
        %v280 = vld [vmem:[%s201 + $0xd0] sm:$0xff]
        %v281 = vld [vmem:[%s201 + $0xd8] sm:$0xff]
        %v282 = vld [vmem:[%s201 + $0xe0] sm:$0xff]
        %v283 = vld [vmem:[%s201 + $0xe8] sm:$0xff]
        %v284 = vld [vmem:[%s201 + $0xf0] sm:$0xff]
        %v285 = vld [vmem:[%s201 + $0xf8] sm:$0xff]
        %v286 = vld [vmem:[%s201 + $0x100] sm:$0xff]
        %v287 = vld [vmem:[%s201 + $0x108] sm:$0xff]
        %v288 = vld [vmem:[%s201 + $0x110] sm:$0xff]
        %v289 = vld [vmem:[%s201 + $0x118] sm:$0xff]
        %v290 = vld [vmem:[%s201 + $0x120] sm:$0xff]
        %v291 = vld [vmem:[%s201 + $0x128] sm:$0xff]
        %v292 = vld [vmem:[%s201 + $0x130] sm:$0xff]
        %v293 = vld [vmem:[%s201 + $0x138] sm:$0xff]
        %v294 = vld [vmem:[%s201 + $0x140] sm:$0xff]
        %v295 = vld [vmem:[%s201 + $0x148] sm:$0xff]
        %v296 = vld [vmem:[%s201 + $0x150] sm:$0xff]
        %v297 = vld [vmem:[%s201 + $0x158] sm:$0xff]
        %v298 = vld [vmem:[%s201 + $0x160] sm:$0xff]
        %v299 = vld [vmem:[%s201 + $0x168] sm:$0xff]
        %v300 = vld [vmem:[%s201 + $0x170] sm:$0xff]
        %v301 = vld [vmem:[%s201 + $0x178] sm:$0xff]
        %v302 = vld [vmem:[%s201 + $0x180] sm:$0xff]
        %v303 = vld [vmem:[%s201 + $0x188] sm:$0xff]
        %v304 = vld [vmem:[%s201 + $0x190] sm:$0xff]
        %v305 = vld [vmem:[%s201 + $0x198] sm:$0xff]
        %v306 = vld [vmem:[%s201 + $0x1a0] sm:$0xff]
        %v307 = vld [vmem:[%s201 + $0x1a8] sm:$0xff]
        %v308 = vld [vmem:[%s201 + $0x1b0] sm:$0xff]
        %v309 = vld [vmem:[%s201 + $0x1b8] sm:$0xff]
        %v310 = vld [vmem:[%s201 + $0x1c0] sm:$0xff]
        %v311 = vld [vmem:[%s201 + $0x1c8] sm:$0xff]
        %v312 = vld [vmem:[%s201 + $0x1d0] sm:$0xff]
        %v313 = vld [vmem:[%s201 + $0x1d8] sm:$0xff]
        %v314 = vld [vmem:[%s201 + $0x1e0] sm:$0xff]
        %v315 = vld [vmem:[%s201 + $0x1e8] sm:$0xff]
        %v316 = vld [vmem:[%s201 + $0x1f0] sm:$0xff]
        %v317 = vld [vmem:[%s201 + $0x1f8] sm:$0xff]
        %v318 = vld [vmem:[%s201 + $0x200] sm:$0xff]
        %v319 = vld [vmem:[%s201 + $0x208] sm:$0xff]
        %v320 = vld [vmem:[%s201 + $0x210] sm:$0xff]
        %v321 = vld [vmem:[%s201 + $0x218] sm:$0xff]
        %v322 = vld [vmem:[%s201 + $0x220] sm:$0xff]
        %v323 = vld [vmem:[%s201 + $0x228] sm:$0xff]
        %v324 = vld [vmem:[%s201 + $0x230] sm:$0xff]
        %v325 = vld [vmem:[%s201 + $0x238] sm:$0xff]
        %v326 = vld [vmem:[%s201 + $0x240] sm:$0xff]
        %v327 = vld [vmem:[%s201 + $0x248] sm:$0xff]
        %v328 = vld [vmem:[%s201 + $0x250] sm:$0xff]
        %v329 = vld [vmem:[%s201 + $0x258] sm:$0xff]
        %v330 = vld [vmem:[%s201 + $0x260] sm:$0xff]
        %v331 = vld [vmem:[%s201 + $0x268] sm:$0xff]
        %v332 = vld [vmem:[%s201 + $0x270] sm:$0xff]
        %v333 = vld [vmem:[%s201 + $0x278] sm:$0xff]
        %v334 = vld [vmem:[%s201 + $0x280] sm:$0xff]
        %v335 = vld [vmem:[%s201 + $0x288] sm:$0xff]
        %v336 = vld [vmem:[%s201 + $0x290] sm:$0xff]
        %v337 = vld [vmem:[%s201 + $0x298] sm:$0xff]
        %v338 = vld [vmem:[%s201 + $0x2a0] sm:$0xff]
        %v339 = vld [vmem:[%s201 + $0x2a8] sm:$0xff]
        %v340 = vld [vmem:[%s201 + $0x2b0] sm:$0xff]
        %v341 = vld [vmem:[%s201 + $0x2b8] sm:$0xff]
        %v342 = vld [vmem:[%s201 + $0x2c0] sm:$0xff]
        %v343 = vld [vmem:[%s201 + $0x2c8] sm:$0xff]
        %v344 = vld [vmem:[%s201 + $0x2d0] sm:$0xff]
        %v345 = vld [vmem:[%s201 + $0x2d8] sm:$0xff]
        %v346 = vld [vmem:[%s201 + $0x2e0] sm:$0xff]
        %v347 = vld [vmem:[%s201 + $0x2e8] sm:$0xff]
        %v348 = vld [vmem:[%s201 + $0x2f0] sm:$0xff]
        %v349 = vld [vmem:[%s201 + $0x2f8] sm:$0xff]
        %v350 = vld [vmem:[%s201 + $0x300] sm:$0xff]
        %v351 = vld [vmem:[%s201 + $0x308] sm:$0xff]
        %v352 = vld [vmem:[%s201 + $0x310] sm:$0xff]
        %v353 = vld [vmem:[%s201 + $0x318] sm:$0xff]
        %v354 = vld [vmem:[%s201 + $0x320] sm:$0xff]
        %v355 = vld [vmem:[%s201 + $0x328] sm:$0xff]
        %v356 = vld [vmem:[%s201 + $0x330] sm:$0xff]
        %v357 = vld [vmem:[%s201 + $0x338] sm:$0xff]
        %v358 = vld [vmem:[%s201 + $0x340] sm:$0xff]
        %v359 = vld [vmem:[%s201 + $0x348] sm:$0xff]
        %v360 = vld [vmem:[%s201 + $0x350] sm:$0xff]
        %v361 = vld [vmem:[%s201 + $0x358] sm:$0xff]
        %v362 = vld [vmem:[%s201 + $0x360] sm:$0xff]
        %v363 = vld [vmem:[%s201 + $0x368] sm:$0xff]
        %v364 = vld [vmem:[%s201 + $0x370] sm:$0xff]
        %v365 = vld [vmem:[%s201 + $0x378] sm:$0xff]
        %v366 = vld [vmem:[%s201 + $0x380] sm:$0xff]
        %v367 = vld [vmem:[%s201 + $0x388] sm:$0xff]
        %v368 = vld [vmem:[%s201 + $0x390] sm:$0xff]
        %v369 = vld [vmem:[%s201 + $0x398] sm:$0xff]
        %v370 = vld [vmem:[%s201 + $0x3a0] sm:$0xff]
        %v371 = vld [vmem:[%s201 + $0x3a8] sm:$0xff]
        %v372 = vld [vmem:[%s201 + $0x3b0] sm:$0xff]
        %v373 = vld [vmem:[%s201 + $0x3b8] sm:$0xff]
        %v374 = vld [vmem:[%s201 + $0x3c0] sm:$0xff]
        %v375 = vld [vmem:[%s201 + $0x3c8] sm:$0xff]
        %v376 = vld [vmem:[%s201 + $0x3d0] sm:$0xff]
        %v377 = vld [vmem:[%s201 + $0x3d8] sm:$0xff]
        %v378 = vld [vmem:[%s201 + $0x3e0] sm:$0xff]
        %v379 = vld [vmem:[%s201 + $0x3e8] sm:$0xff]
        %v380 = vld [vmem:[%s201 + $0x3f0] sm:$0xff]
        %v381 = vld [vmem:[%s201 + $0x3f8] sm:$0xff]
        %v382 = vunpack.c.l.s8.bf16 %v254
        %v383 = vunpack.c.l.s8.bf16 %v255
        %v384 = vunpack.c.h.s8.bf16 %v254
        %v385 = vunpack.c.h.s8.bf16 %v255
        %v386 = vunpack.c.l.s8.bf16 %v256
        %v387 = vunpack.c.l.s8.bf16 %v257
        %v388 = vunpack.c.h.s8.bf16 %v256
        %v389 = vunpack.c.h.s8.bf16 %v257
        %v390 = vunpack.c.l.s8.bf16 %v258
        %v391 = vunpack.c.l.s8.bf16 %v259
        %v392 = vunpack.c.h.s8.bf16 %v258
        %v393 = vunpack.c.h.s8.bf16 %v259
        %v394 = vunpack.c.l.s8.bf16 %v260
        %v395 = vunpack.c.l.s8.bf16 %v261
        %v396 = vunpack.c.h.s8.bf16 %v260
        %v397 = vunpack.c.h.s8.bf16 %v261
        %v398 = vunpack.c.l.s8.bf16 %v262
        %v399 = vunpack.c.l.s8.bf16 %v263
        %v400 = vunpack.c.h.s8.bf16 %v262
        %v401 = vunpack.c.h.s8.bf16 %v263
        %v402 = vunpack.c.l.s8.bf16 %v264
        %v403 = vunpack.c.l.s8.bf16 %v265
        %v404 = vunpack.c.h.s8.bf16 %v264
        %v405 = vunpack.c.h.s8.bf16 %v265
        %v406 = vunpack.c.l.s8.bf16 %v266
        %v407 = vunpack.c.l.s8.bf16 %v267
        %v408 = vunpack.c.h.s8.bf16 %v266
        %v409 = vunpack.c.h.s8.bf16 %v267
        %v410 = vunpack.c.l.s8.bf16 %v268
        %v411 = vunpack.c.l.s8.bf16 %v269
        %v412 = vunpack.c.h.s8.bf16 %v268
        %v413 = vunpack.c.h.s8.bf16 %v269
        %v414 = vunpack.c.l.s8.bf16 %v270
        %v415 = vunpack.c.l.s8.bf16 %v271
        %v416 = vunpack.c.h.s8.bf16 %v270
        %v417 = vunpack.c.h.s8.bf16 %v271
        %v418 = vunpack.c.l.s8.bf16 %v272
        %v419 = vunpack.c.l.s8.bf16 %v273
        %v420 = vunpack.c.h.s8.bf16 %v272
        %v421 = vunpack.c.h.s8.bf16 %v273
        %v422 = vunpack.c.l.s8.bf16 %v274
        %v423 = vunpack.c.l.s8.bf16 %v275
        %v424 = vunpack.c.h.s8.bf16 %v274
        %v425 = vunpack.c.h.s8.bf16 %v275
        %v426 = vunpack.c.l.s8.bf16 %v276
        %v427 = vunpack.c.l.s8.bf16 %v277
        %v428 = vunpack.c.h.s8.bf16 %v276
        %v429 = vunpack.c.h.s8.bf16 %v277
        %v430 = vunpack.c.l.s8.bf16 %v278
        %v431 = vunpack.c.l.s8.bf16 %v279
        %v432 = vunpack.c.h.s8.bf16 %v278
        %v433 = vunpack.c.h.s8.bf16 %v279
        %v434 = vunpack.c.l.s8.bf16 %v280
        %v435 = vunpack.c.l.s8.bf16 %v281
        %v436 = vunpack.c.h.s8.bf16 %v280
        %v437 = vunpack.c.h.s8.bf16 %v281
        %v438 = vunpack.c.l.s8.bf16 %v282
        %v439 = vunpack.c.l.s8.bf16 %v283
        %v440 = vunpack.c.h.s8.bf16 %v282
        %v441 = vunpack.c.h.s8.bf16 %v283
        %v442 = vunpack.c.l.s8.bf16 %v284
        %v443 = vunpack.c.l.s8.bf16 %v285
        %v444 = vunpack.c.h.s8.bf16 %v284
        %v445 = vunpack.c.h.s8.bf16 %v285
        %v446 = vunpack.c.l.s8.bf16 %v286
        %v447 = vunpack.c.l.s8.bf16 %v287
        %v448 = vunpack.c.h.s8.bf16 %v286
        %v449 = vunpack.c.h.s8.bf16 %v287
        %v450 = vunpack.c.l.s8.bf16 %v288
        %v451 = vunpack.c.l.s8.bf16 %v289
        %v452 = vunpack.c.h.s8.bf16 %v288
        %v453 = vunpack.c.h.s8.bf16 %v289
        %v454 = vunpack.c.l.s8.bf16 %v290
        %v455 = vunpack.c.l.s8.bf16 %v291
        %v456 = vunpack.c.h.s8.bf16 %v290
        %v457 = vunpack.c.h.s8.bf16 %v291
        %v458 = vunpack.c.l.s8.bf16 %v292
        %v459 = vunpack.c.l.s8.bf16 %v293
        %v460 = vunpack.c.h.s8.bf16 %v292
        %v461 = vunpack.c.h.s8.bf16 %v293
        %v462 = vunpack.c.l.s8.bf16 %v294
        %v463 = vunpack.c.l.s8.bf16 %v295
        %v464 = vunpack.c.h.s8.bf16 %v294
        %v465 = vunpack.c.h.s8.bf16 %v295
        %v466 = vunpack.c.l.s8.bf16 %v296
        %v467 = vunpack.c.l.s8.bf16 %v297
        %v468 = vunpack.c.h.s8.bf16 %v296
        %v469 = vunpack.c.h.s8.bf16 %v297
        %v470 = vunpack.c.l.s8.bf16 %v298
        %v471 = vunpack.c.l.s8.bf16 %v299
        %v472 = vunpack.c.h.s8.bf16 %v298
        %v473 = vunpack.c.h.s8.bf16 %v299
        %v474 = vunpack.c.l.s8.bf16 %v300
        %v475 = vunpack.c.l.s8.bf16 %v301
        %v476 = vunpack.c.h.s8.bf16 %v300
        %v477 = vunpack.c.h.s8.bf16 %v301
        %v478 = vunpack.c.l.s8.bf16 %v302
        %v479 = vunpack.c.l.s8.bf16 %v303
        %v480 = vunpack.c.h.s8.bf16 %v302
        %v481 = vunpack.c.h.s8.bf16 %v303
        %v482 = vunpack.c.l.s8.bf16 %v304
        %v483 = vunpack.c.l.s8.bf16 %v305
        %v484 = vunpack.c.h.s8.bf16 %v304
        %v485 = vunpack.c.h.s8.bf16 %v305
        %v486 = vunpack.c.l.s8.bf16 %v306
        %v487 = vunpack.c.l.s8.bf16 %v307
        %v488 = vunpack.c.h.s8.bf16 %v306
        %v489 = vunpack.c.h.s8.bf16 %v307
        %v490 = vunpack.c.l.s8.bf16 %v308
        %v491 = vunpack.c.l.s8.bf16 %v309
        %v492 = vunpack.c.h.s8.bf16 %v308
        %v493 = vunpack.c.h.s8.bf16 %v309
        %v494 = vunpack.c.l.s8.bf16 %v310
        %v495 = vunpack.c.l.s8.bf16 %v311
        %v496 = vunpack.c.h.s8.bf16 %v310
        %v497 = vunpack.c.h.s8.bf16 %v311
        %v498 = vunpack.c.l.s8.bf16 %v312
        %v499 = vunpack.c.l.s8.bf16 %v313
        %v500 = vunpack.c.h.s8.bf16 %v312
        %v501 = vunpack.c.h.s8.bf16 %v313
        %v502 = vunpack.c.l.s8.bf16 %v314
        %v503 = vunpack.c.l.s8.bf16 %v315
        %v504 = vunpack.c.h.s8.bf16 %v314
        %v505 = vunpack.c.h.s8.bf16 %v315
        %v506 = vunpack.c.l.s8.bf16 %v316
        %v507 = vunpack.c.l.s8.bf16 %v317
        %v508 = vunpack.c.h.s8.bf16 %v316
        %v509 = vunpack.c.h.s8.bf16 %v317
        %v510 = vunpack.c.l.s8.bf16 %v318
        %v511 = vunpack.c.l.s8.bf16 %v319
        %v512 = vunpack.c.h.s8.bf16 %v318
        %v513 = vunpack.c.h.s8.bf16 %v319
        %v514 = vunpack.c.l.s8.bf16 %v320
        %v515 = vunpack.c.l.s8.bf16 %v321
        %v516 = vunpack.c.h.s8.bf16 %v320
        %v517 = vunpack.c.h.s8.bf16 %v321
        %v518 = vunpack.c.l.s8.bf16 %v322
        %v519 = vunpack.c.l.s8.bf16 %v323
        %v520 = vunpack.c.h.s8.bf16 %v322
        %v521 = vunpack.c.h.s8.bf16 %v323
        %v522 = vunpack.c.l.s8.bf16 %v324
        %v523 = vunpack.c.l.s8.bf16 %v325
        %v524 = vunpack.c.h.s8.bf16 %v324
        %v525 = vunpack.c.h.s8.bf16 %v325
        %v526 = vunpack.c.l.s8.bf16 %v326
        %v527 = vunpack.c.l.s8.bf16 %v327
        %v528 = vunpack.c.h.s8.bf16 %v326
        %v529 = vunpack.c.h.s8.bf16 %v327
        %v530 = vunpack.c.l.s8.bf16 %v328
        %v531 = vunpack.c.l.s8.bf16 %v329
        %v532 = vunpack.c.h.s8.bf16 %v328
        %v533 = vunpack.c.h.s8.bf16 %v329
        %v534 = vunpack.c.l.s8.bf16 %v330
        %v535 = vunpack.c.l.s8.bf16 %v331
        %v536 = vunpack.c.h.s8.bf16 %v330
        %v537 = vunpack.c.h.s8.bf16 %v331
        %v538 = vunpack.c.l.s8.bf16 %v332
        %v539 = vunpack.c.l.s8.bf16 %v333
        %v540 = vunpack.c.h.s8.bf16 %v332
        %v541 = vunpack.c.h.s8.bf16 %v333
        %v542 = vunpack.c.l.s8.bf16 %v334
        %v543 = vunpack.c.l.s8.bf16 %v335
        %v544 = vunpack.c.h.s8.bf16 %v334
        %v545 = vunpack.c.h.s8.bf16 %v335
        %v546 = vunpack.c.l.s8.bf16 %v336
        %v547 = vunpack.c.l.s8.bf16 %v337
        %v548 = vunpack.c.h.s8.bf16 %v336
        %v549 = vunpack.c.h.s8.bf16 %v337
        %v550 = vunpack.c.l.s8.bf16 %v338
        %v551 = vunpack.c.l.s8.bf16 %v339
        %v552 = vunpack.c.h.s8.bf16 %v338
        %v553 = vunpack.c.h.s8.bf16 %v339
        %v554 = vunpack.c.l.s8.bf16 %v340
        %v555 = vunpack.c.l.s8.bf16 %v341
        %v556 = vunpack.c.h.s8.bf16 %v340
        %v557 = vunpack.c.h.s8.bf16 %v341
        %v558 = vunpack.c.l.s8.bf16 %v342
        %v559 = vunpack.c.l.s8.bf16 %v343
        %v560 = vunpack.c.h.s8.bf16 %v342
        %v561 = vunpack.c.h.s8.bf16 %v343
        %v562 = vunpack.c.l.s8.bf16 %v344
        %v563 = vunpack.c.l.s8.bf16 %v345
        %v564 = vunpack.c.h.s8.bf16 %v344
        %v565 = vunpack.c.h.s8.bf16 %v345
        %v566 = vunpack.c.l.s8.bf16 %v346
        %v567 = vunpack.c.l.s8.bf16 %v347
        %v568 = vunpack.c.h.s8.bf16 %v346
        %v569 = vunpack.c.h.s8.bf16 %v347
        %v570 = vunpack.c.l.s8.bf16 %v348
        %v571 = vunpack.c.l.s8.bf16 %v349
        %v572 = vunpack.c.h.s8.bf16 %v348
        %v573 = vunpack.c.h.s8.bf16 %v349
        %v574 = vunpack.c.l.s8.bf16 %v350
        %v575 = vunpack.c.l.s8.bf16 %v351
        %v576 = vunpack.c.h.s8.bf16 %v350
        %v577 = vunpack.c.h.s8.bf16 %v351
        %v578 = vunpack.c.l.s8.bf16 %v352
        %v579 = vunpack.c.l.s8.bf16 %v353
        %v580 = vunpack.c.h.s8.bf16 %v352
        %v581 = vunpack.c.h.s8.bf16 %v353
        %v582 = vunpack.c.l.s8.bf16 %v354
        %v583 = vunpack.c.l.s8.bf16 %v355
        %v584 = vunpack.c.h.s8.bf16 %v354
        %v585 = vunpack.c.h.s8.bf16 %v355
        %v586 = vunpack.c.l.s8.bf16 %v356
        %v587 = vunpack.c.l.s8.bf16 %v357
        %v588 = vunpack.c.h.s8.bf16 %v356
        %v589 = vunpack.c.h.s8.bf16 %v357
        %v590 = vunpack.c.l.s8.bf16 %v358
        %v591 = vunpack.c.l.s8.bf16 %v359
        %v592 = vunpack.c.h.s8.bf16 %v358
        %v593 = vunpack.c.h.s8.bf16 %v359
        %v594 = vunpack.c.l.s8.bf16 %v360
        %v595 = vunpack.c.l.s8.bf16 %v361
        %v596 = vunpack.c.h.s8.bf16 %v360
        %v597 = vunpack.c.h.s8.bf16 %v361
        %v598 = vunpack.c.l.s8.bf16 %v362
        %v599 = vunpack.c.l.s8.bf16 %v363
        %v600 = vunpack.c.h.s8.bf16 %v362
        %v601 = vunpack.c.h.s8.bf16 %v363
        %v602 = vunpack.c.l.s8.bf16 %v364
        %v603 = vunpack.c.l.s8.bf16 %v365
        %v604 = vunpack.c.h.s8.bf16 %v364
        %v605 = vunpack.c.h.s8.bf16 %v365
        %v606 = vunpack.c.l.s8.bf16 %v366
        %v607 = vunpack.c.l.s8.bf16 %v367
        %v608 = vunpack.c.h.s8.bf16 %v366
        %v609 = vunpack.c.h.s8.bf16 %v367
        %v610 = vunpack.c.l.s8.bf16 %v368
        %v611 = vunpack.c.l.s8.bf16 %v369
        %v612 = vunpack.c.h.s8.bf16 %v368
        %v613 = vunpack.c.h.s8.bf16 %v369
        %v614 = vunpack.c.l.s8.bf16 %v370
        %v615 = vunpack.c.l.s8.bf16 %v371
        %v616 = vunpack.c.h.s8.bf16 %v370
        %v617 = vunpack.c.h.s8.bf16 %v371
        %v618 = vunpack.c.l.s8.bf16 %v372
        %v619 = vunpack.c.l.s8.bf16 %v373
        %v620 = vunpack.c.h.s8.bf16 %v372
        %v621 = vunpack.c.h.s8.bf16 %v373
        %v622 = vunpack.c.l.s8.bf16 %v374
        %v623 = vunpack.c.l.s8.bf16 %v375
        %v624 = vunpack.c.h.s8.bf16 %v374
        %v625 = vunpack.c.h.s8.bf16 %v375
        %v626 = vunpack.c.l.s8.bf16 %v376
        %v627 = vunpack.c.l.s8.bf16 %v377
        %v628 = vunpack.c.h.s8.bf16 %v376
        %v629 = vunpack.c.h.s8.bf16 %v377
        %v630 = vunpack.c.l.s8.bf16 %v378
        %v631 = vunpack.c.l.s8.bf16 %v379
        %v632 = vunpack.c.h.s8.bf16 %v378
        %v633 = vunpack.c.h.s8.bf16 %v379
        %v634 = vunpack.c.l.s8.bf16 %v380
        %v635 = vunpack.c.l.s8.bf16 %v381
        %v636 = vunpack.c.h.s8.bf16 %v380
        %v637 = vunpack.c.h.s8.bf16 %v381
        %v638 = vld [vmem:[%s231] sm:$0xff]
        %v639 = vld [vmem:[%s231 + $0x8] sm:$0xff]
        %v640 = vld [vmem:[%s231 + $0x10] sm:$0xff]
        %v641 = vld [vmem:[%s231 + $0x18] sm:$0xff]
        %v642 = vld [vmem:[%s236] sm:$0xff]
        %v643 = vld [vmem:[%s236 + $0x8] sm:$0xff]
        %v644 = vld [vmem:[%s236 + $0x10] sm:$0xff]
        %v645 = vld [vmem:[%s236 + $0x18] sm:$0xff]
        %v646 = vld [vmem:[%s236 + $0x20] sm:$0xff]
        %v647 = vld [vmem:[%s236 + $0x28] sm:$0xff]
        %v648 = vld [vmem:[%s236 + $0x30] sm:$0xff]
        %v649 = vld [vmem:[%s236 + $0x38] sm:$0xff]
        %v650 = vld [vmem:[%s236 + $0x40] sm:$0xff]
        %v651 = vld [vmem:[%s236 + $0x48] sm:$0xff]
        %v652 = vld [vmem:[%s236 + $0x50] sm:$0xff]
        %v653 = vld [vmem:[%s236 + $0x58] sm:$0xff]
        %v654 = vld [vmem:[%s236 + $0x60] sm:$0xff]
        %v655 = vld [vmem:[%s236 + $0x68] sm:$0xff]
        %v656 = vld [vmem:[%s236 + $0x70] sm:$0xff]
        %v657 = vld [vmem:[%s236 + $0x78] sm:$0xff]
        %v674 = vunpack.c.l.b16 %v642
        %v675 = vunpack.c.h.b16 %v642
        %v676 = vunpack.c.l.b16 %v643
        %v677 = vunpack.c.h.b16 %v643
        %v678 = vunpack.c.l.b16 %v644
        %v679 = vunpack.c.h.b16 %v644
        %v680 = vunpack.c.l.b16 %v645
        %v681 = vunpack.c.h.b16 %v645
        %v682 = vunpack.c.l.b16 %v646
        %v683 = vunpack.c.h.b16 %v646
        %v684 = vunpack.c.l.b16 %v647
        %v685 = vunpack.c.h.b16 %v647
        %v686 = vunpack.c.l.b16 %v648
        %v687 = vunpack.c.h.b16 %v648
        %v688 = vunpack.c.l.b16 %v649
        %v689 = vunpack.c.h.b16 %v649
        %v690 = vunpack.c.l.b16 %v650
        %v691 = vunpack.c.h.b16 %v650
        %v692 = vunpack.c.l.b16 %v651
        %v693 = vunpack.c.h.b16 %v651
        %v694 = vunpack.c.l.b16 %v652
        %v695 = vunpack.c.h.b16 %v652
        %v696 = vunpack.c.l.b16 %v653
        %v697 = vunpack.c.h.b16 %v653
        %v698 = vunpack.c.l.b16 %v654
        %v699 = vunpack.c.h.b16 %v654
        %v700 = vunpack.c.l.b16 %v655
        %v701 = vunpack.c.h.b16 %v655
        %v702 = vunpack.c.l.b16 %v656
        %v703 = vunpack.c.h.b16 %v656
        %v704 = vunpack.c.l.b16 %v657
        %v705 = vunpack.c.h.b16 %v657
        %v706 = vpack.c.b16 %v690, %v674
        %v707 = vpack.c.b16 %v691, %v675
        %v708 = vpack.c.b16 %v692, %v676
        %v709 = vpack.c.b16 %v693, %v677
        %v710 = vpack.c.b16 %v694, %v678
        %v711 = vpack.c.b16 %v695, %v679
        %v712 = vpack.c.b16 %v696, %v680
        %v713 = vpack.c.b16 %v697, %v681
        %v714 = vpack.c.b16 %v698, %v682
        %v715 = vpack.c.b16 %v699, %v683
        %v716 = vpack.c.b16 %v700, %v684
        %v717 = vpack.c.b16 %v701, %v685
        %v718 = vpack.c.b16 %v702, %v686
        %v719 = vpack.c.b16 %v703, %v687
        %v720 = vpack.c.b16 %v704, %v688
        %v721 = vpack.c.b16 %v705, %v689
        %738 = vmatprep.subr.bf16.mxu0 %v397
        %739 = vmatpush1.bf16.msra.mxu0 %v396
        %740 = vmatprep.subr.bf16.mxu0 %v395
        %741 = vmatpush1.bf16.msra.mxu0 %v394
        %742 = vmatprep.subr.bf16.mxu0 %v393
        %743 = vmatpush1.bf16.msra.mxu0 %v392
        %744 = vmatprep.subr.bf16.mxu0 %v391
        %745 = vmatpush1.bf16.msra.mxu0 %v390
        %746 = vmatprep.subr.bf16.mxu0 %v389
        %747 = vmatpush1.bf16.msra.mxu0 %v388
        %748 = vmatprep.subr.bf16.mxu0 %v387
        %749 = vmatpush1.bf16.msra.mxu0 %v386
        %750 = vmatprep.subr.bf16.mxu0 %v385
        %751 = vmatpush1.bf16.msra.mxu0 %v384
        %752 = vmatprep.subr.bf16.mxu0 %v383
        %753 = vmatpush1.bf16.msra.mxu0 %v382
        %754 = vmatprep.subr.bf16.mxu0 %v413
        %755 = vmatpush2.bf16.msra.mxu0 %v412
        %756 = vmatprep.subr.bf16.mxu0 %v411
        %757 = vmatpush2.bf16.msra.mxu0 %v410
        %758 = vmatprep.subr.bf16.mxu0 %v409
        %759 = vmatpush2.bf16.msra.mxu0 %v408
        %760 = vmatprep.subr.bf16.mxu0 %v407
        %761 = vmatpush2.bf16.msra.mxu0 %v406
        %762 = vmatprep.subr.bf16.mxu0 %v405
        %763 = vmatpush2.bf16.msra.mxu0 %v404
        %764 = vmatprep.subr.bf16.mxu0 %v403
        %765 = vmatpush2.bf16.msra.mxu0 %v402
        %766 = vmatprep.subr.bf16.mxu0 %v401
        %767 = vmatpush2.bf16.msra.mxu0 %v400
        %768 = vmatprep.subr.bf16.mxu0 %v399
        %769 = vmatpush2.bf16.msra.mxu0 %v398
        %770 = vmatprep.mubr.bf16.mxu0 %v707
        %771 = vmatmul.mubr.bf16.gmra.mxu0 %v706
        %v772 = vpop.f32.mrf.mxu0
        %v773 = vadd.f32 0.0, %v772
        %v774 = vpop.f32.mrf.mxu0
        %v775 = vadd.f32 0.0, %v774
        %v776 = vpop.f32.mrf.mxu0
        %v777 = vadd.f32 0.0, %v776
        %v778 = vpop.f32.mrf.mxu0
        %v779 = vadd.f32 0.0, %v778
        %780 = vdwg.mxu0
        %781 = vmatprep.subr.bf16.mxu0 %v429
        %782 = vmatpush1.bf16.msra.mxu0 %v428
        %783 = vmatprep.subr.bf16.mxu0 %v427
        %784 = vmatpush1.bf16.msra.mxu0 %v426
        %785 = vmatprep.subr.bf16.mxu0 %v425
        %786 = vmatpush1.bf16.msra.mxu0 %v424
        %787 = vmatprep.subr.bf16.mxu0 %v423
        %788 = vmatpush1.bf16.msra.mxu0 %v422
        %789 = vmatprep.subr.bf16.mxu0 %v421
        %790 = vmatpush1.bf16.msra.mxu0 %v420
        %791 = vmatprep.subr.bf16.mxu0 %v419
        %792 = vmatpush1.bf16.msra.mxu0 %v418
        %793 = vmatprep.subr.bf16.mxu0 %v417
        %794 = vmatpush1.bf16.msra.mxu0 %v416
        %795 = vmatprep.subr.bf16.mxu0 %v415
        %796 = vmatpush1.bf16.msra.mxu0 %v414
        %797 = vmatprep.subr.bf16.mxu0 %v445
        %798 = vmatpush2.bf16.msra.mxu0 %v444
        %799 = vmatprep.subr.bf16.mxu0 %v443
        %800 = vmatpush2.bf16.msra.mxu0 %v442
        %801 = vmatprep.subr.bf16.mxu0 %v441
        %802 = vmatpush2.bf16.msra.mxu0 %v440
        %803 = vmatprep.subr.bf16.mxu0 %v439
        %804 = vmatpush2.bf16.msra.mxu0 %v438
        %805 = vmatprep.subr.bf16.mxu0 %v437
        %806 = vmatpush2.bf16.msra.mxu0 %v436
        %807 = vmatprep.subr.bf16.mxu0 %v435
        %808 = vmatpush2.bf16.msra.mxu0 %v434
        %809 = vmatprep.subr.bf16.mxu0 %v433
        %810 = vmatpush2.bf16.msra.mxu0 %v432
        %811 = vmatprep.subr.bf16.mxu0 %v431
        %812 = vmatpush2.bf16.msra.mxu0 %v430
        %813 = vmatprep.mubr.bf16.mxu0 %v709
        %814 = vmatmul.mubr.bf16.gmra.mxu0 %v708
        %v815 = vpop.f32.mrf.mxu0
        %v816 = vadd.f32 %v773, %v815
        %v817 = vpop.f32.mrf.mxu0
        %v818 = vadd.f32 %v775, %v817
        %v819 = vpop.f32.mrf.mxu0
        %v820 = vadd.f32 %v777, %v819
        %v821 = vpop.f32.mrf.mxu0
        %v822 = vadd.f32 %v779, %v821
        %823 = vdwg.mxu0
        %824 = vmatprep.subr.bf16.mxu0 %v461
        %825 = vmatpush1.bf16.msra.mxu0 %v460
        %826 = vmatprep.subr.bf16.mxu0 %v459
        %827 = vmatpush1.bf16.msra.mxu0 %v458
        %828 = vmatprep.subr.bf16.mxu0 %v457
        %829 = vmatpush1.bf16.msra.mxu0 %v456
        %830 = vmatprep.subr.bf16.mxu0 %v455
        %831 = vmatpush1.bf16.msra.mxu0 %v454
        %832 = vmatprep.subr.bf16.mxu0 %v453
        %833 = vmatpush1.bf16.msra.mxu0 %v452
        %834 = vmatprep.subr.bf16.mxu0 %v451
        %835 = vmatpush1.bf16.msra.mxu0 %v450
        %836 = vmatprep.subr.bf16.mxu0 %v449
        %837 = vmatpush1.bf16.msra.mxu0 %v448
        %838 = vmatprep.subr.bf16.mxu0 %v447
        %839 = vmatpush1.bf16.msra.mxu0 %v446
        %840 = vmatprep.subr.bf16.mxu0 %v477
        %841 = vmatpush2.bf16.msra.mxu0 %v476
        %842 = vmatprep.subr.bf16.mxu0 %v475
        %843 = vmatpush2.bf16.msra.mxu0 %v474
        %844 = vmatprep.subr.bf16.mxu0 %v473
        %845 = vmatpush2.bf16.msra.mxu0 %v472
        %846 = vmatprep.subr.bf16.mxu0 %v471
        %847 = vmatpush2.bf16.msra.mxu0 %v470
        %848 = vmatprep.subr.bf16.mxu0 %v469
        %849 = vmatpush2.bf16.msra.mxu0 %v468
        %850 = vmatprep.subr.bf16.mxu0 %v467
        %851 = vmatpush2.bf16.msra.mxu0 %v466
        %852 = vmatprep.subr.bf16.mxu0 %v465
        %853 = vmatpush2.bf16.msra.mxu0 %v464
        %854 = vmatprep.subr.bf16.mxu0 %v463
        %855 = vmatpush2.bf16.msra.mxu0 %v462
        %856 = vmatprep.mubr.bf16.mxu0 %v711
        %857 = vmatmul.mubr.bf16.gmra.mxu0 %v710
        %v858 = vpop.f32.mrf.mxu0
        %v859 = vadd.f32 %v816, %v858
        %v860 = vpop.f32.mrf.mxu0
        %v861 = vadd.f32 %v818, %v860
        %v862 = vpop.f32.mrf.mxu0
        %v863 = vadd.f32 %v820, %v862
        %v864 = vpop.f32.mrf.mxu0
        %v865 = vadd.f32 %v822, %v864
        %866 = vdwg.mxu0
        %867 = vmatprep.subr.bf16.mxu0 %v493
        %868 = vmatpush1.bf16.msra.mxu0 %v492
        %869 = vmatprep.subr.bf16.mxu0 %v491
        %870 = vmatpush1.bf16.msra.mxu0 %v490
        %871 = vmatprep.subr.bf16.mxu0 %v489
        %872 = vmatpush1.bf16.msra.mxu0 %v488
        %873 = vmatprep.subr.bf16.mxu0 %v487
        %874 = vmatpush1.bf16.msra.mxu0 %v486
        %875 = vmatprep.subr.bf16.mxu0 %v485
        %876 = vmatpush1.bf16.msra.mxu0 %v484
        %877 = vmatprep.subr.bf16.mxu0 %v483
        %878 = vmatpush1.bf16.msra.mxu0 %v482
        %879 = vmatprep.subr.bf16.mxu0 %v481
        %880 = vmatpush1.bf16.msra.mxu0 %v480
        %881 = vmatprep.subr.bf16.mxu0 %v479
        %882 = vmatpush1.bf16.msra.mxu0 %v478
        %883 = vmatprep.subr.bf16.mxu0 %v509
        %884 = vmatpush2.bf16.msra.mxu0 %v508
        %885 = vmatprep.subr.bf16.mxu0 %v507
        %886 = vmatpush2.bf16.msra.mxu0 %v506
        %887 = vmatprep.subr.bf16.mxu0 %v505
        %888 = vmatpush2.bf16.msra.mxu0 %v504
        %889 = vmatprep.subr.bf16.mxu0 %v503
        %890 = vmatpush2.bf16.msra.mxu0 %v502
        %891 = vmatprep.subr.bf16.mxu0 %v501
        %892 = vmatpush2.bf16.msra.mxu0 %v500
        %893 = vmatprep.subr.bf16.mxu0 %v499
        %894 = vmatpush2.bf16.msra.mxu0 %v498
        %895 = vmatprep.subr.bf16.mxu0 %v497
        %896 = vmatpush2.bf16.msra.mxu0 %v496
        %897 = vmatprep.subr.bf16.mxu0 %v495
        %898 = vmatpush2.bf16.msra.mxu0 %v494
        %899 = vmatprep.mubr.bf16.mxu0 %v713
        %900 = vmatmul.mubr.bf16.gmra.mxu0 %v712
        %v901 = vpop.f32.mrf.mxu0
        %v902 = vadd.f32 %v859, %v901
        %v903 = vpop.f32.mrf.mxu0
        %v904 = vadd.f32 %v861, %v903
        %v905 = vpop.f32.mrf.mxu0
        %v906 = vadd.f32 %v863, %v905
        %v907 = vpop.f32.mrf.mxu0
        %v908 = vadd.f32 %v865, %v907
        %909 = vdwg.mxu0
        %910 = vmatprep.subr.bf16.mxu0 %v525
        %911 = vmatpush1.bf16.msra.mxu0 %v524
        %912 = vmatprep.subr.bf16.mxu0 %v523
        %913 = vmatpush1.bf16.msra.mxu0 %v522
        %914 = vmatprep.subr.bf16.mxu0 %v521
        %915 = vmatpush1.bf16.msra.mxu0 %v520
        %916 = vmatprep.subr.bf16.mxu0 %v519
        %917 = vmatpush1.bf16.msra.mxu0 %v518
        %918 = vmatprep.subr.bf16.mxu0 %v517
        %919 = vmatpush1.bf16.msra.mxu0 %v516
        %920 = vmatprep.subr.bf16.mxu0 %v515
        %921 = vmatpush1.bf16.msra.mxu0 %v514
        %922 = vmatprep.subr.bf16.mxu0 %v513
        %923 = vmatpush1.bf16.msra.mxu0 %v512
        %924 = vmatprep.subr.bf16.mxu0 %v511
        %925 = vmatpush1.bf16.msra.mxu0 %v510
        %926 = vmatprep.subr.bf16.mxu0 %v541
        %927 = vmatpush2.bf16.msra.mxu0 %v540
        %928 = vmatprep.subr.bf16.mxu0 %v539
        %929 = vmatpush2.bf16.msra.mxu0 %v538
        %930 = vmatprep.subr.bf16.mxu0 %v537
        %931 = vmatpush2.bf16.msra.mxu0 %v536
        %932 = vmatprep.subr.bf16.mxu0 %v535
        %933 = vmatpush2.bf16.msra.mxu0 %v534
        %934 = vmatprep.subr.bf16.mxu0 %v533
        %935 = vmatpush2.bf16.msra.mxu0 %v532
        %936 = vmatprep.subr.bf16.mxu0 %v531
        %937 = vmatpush2.bf16.msra.mxu0 %v530
        %938 = vmatprep.subr.bf16.mxu0 %v529
        %939 = vmatpush2.bf16.msra.mxu0 %v528
        %940 = vmatprep.subr.bf16.mxu0 %v527
        %941 = vmatpush2.bf16.msra.mxu0 %v526
        %942 = vmatprep.mubr.bf16.mxu0 %v715
        %943 = vmatmul.mubr.bf16.gmra.mxu0 %v714
        %v944 = vpop.f32.mrf.mxu0
        %v945 = vadd.f32 %v902, %v944
        %v946 = vpop.f32.mrf.mxu0
        %v947 = vadd.f32 %v904, %v946
        %v948 = vpop.f32.mrf.mxu0
        %v949 = vadd.f32 %v906, %v948
        %v950 = vpop.f32.mrf.mxu0
        %v951 = vadd.f32 %v908, %v950
        %952 = vdwg.mxu0
        %953 = vmatprep.subr.bf16.mxu0 %v557
        %954 = vmatpush1.bf16.msra.mxu0 %v556
        %955 = vmatprep.subr.bf16.mxu0 %v555
        %956 = vmatpush1.bf16.msra.mxu0 %v554
        %957 = vmatprep.subr.bf16.mxu0 %v553
        %958 = vmatpush1.bf16.msra.mxu0 %v552
        %959 = vmatprep.subr.bf16.mxu0 %v551
        %960 = vmatpush1.bf16.msra.mxu0 %v550
        %961 = vmatprep.subr.bf16.mxu0 %v549
        %962 = vmatpush1.bf16.msra.mxu0 %v548
        %963 = vmatprep.subr.bf16.mxu0 %v547
        %964 = vmatpush1.bf16.msra.mxu0 %v546
        %965 = vmatprep.subr.bf16.mxu0 %v545
        %966 = vmatpush1.bf16.msra.mxu0 %v544
        %967 = vmatprep.subr.bf16.mxu0 %v543
        %968 = vmatpush1.bf16.msra.mxu0 %v542
        %969 = vmatprep.subr.bf16.mxu0 %v573
        %970 = vmatpush2.bf16.msra.mxu0 %v572
        %971 = vmatprep.subr.bf16.mxu0 %v571
        %972 = vmatpush2.bf16.msra.mxu0 %v570
        %973 = vmatprep.subr.bf16.mxu0 %v569
        %974 = vmatpush2.bf16.msra.mxu0 %v568
        %975 = vmatprep.subr.bf16.mxu0 %v567
        %976 = vmatpush2.bf16.msra.mxu0 %v566
        %977 = vmatprep.subr.bf16.mxu0 %v565
        %978 = vmatpush2.bf16.msra.mxu0 %v564
        %979 = vmatprep.subr.bf16.mxu0 %v563
        %980 = vmatpush2.bf16.msra.mxu0 %v562
        %981 = vmatprep.subr.bf16.mxu0 %v561
        %982 = vmatpush2.bf16.msra.mxu0 %v560
        %983 = vmatprep.subr.bf16.mxu0 %v559
        %984 = vmatpush2.bf16.msra.mxu0 %v558
        %985 = vmatprep.mubr.bf16.mxu0 %v717
        %986 = vmatmul.mubr.bf16.gmra.mxu0 %v716
        %v987 = vpop.f32.mrf.mxu0
        %v988 = vadd.f32 %v945, %v987
        %v989 = vpop.f32.mrf.mxu0
        %v990 = vadd.f32 %v947, %v989
        %v991 = vpop.f32.mrf.mxu0
        %v992 = vadd.f32 %v949, %v991
        %v993 = vpop.f32.mrf.mxu0
        %v994 = vadd.f32 %v951, %v993
        %995 = vdwg.mxu0
        %996 = vmatprep.subr.bf16.mxu0 %v589
        %997 = vmatpush1.bf16.msra.mxu0 %v588
        %998 = vmatprep.subr.bf16.mxu0 %v587
        %999 = vmatpush1.bf16.msra.mxu0 %v586
        %1000 = vmatprep.subr.bf16.mxu0 %v585
        %1001 = vmatpush1.bf16.msra.mxu0 %v584
        %1002 = vmatprep.subr.bf16.mxu0 %v583
        %1003 = vmatpush1.bf16.msra.mxu0 %v582
        %1004 = vmatprep.subr.bf16.mxu0 %v581
        %1005 = vmatpush1.bf16.msra.mxu0 %v580
        %1006 = vmatprep.subr.bf16.mxu0 %v579
        %1007 = vmatpush1.bf16.msra.mxu0 %v578
        %1008 = vmatprep.subr.bf16.mxu0 %v577
        %1009 = vmatpush1.bf16.msra.mxu0 %v576
        %1010 = vmatprep.subr.bf16.mxu0 %v575
        %1011 = vmatpush1.bf16.msra.mxu0 %v574
        %1012 = vmatprep.subr.bf16.mxu0 %v605
        %1013 = vmatpush2.bf16.msra.mxu0 %v604
        %1014 = vmatprep.subr.bf16.mxu0 %v603
        %1015 = vmatpush2.bf16.msra.mxu0 %v602
        %1016 = vmatprep.subr.bf16.mxu0 %v601
        %1017 = vmatpush2.bf16.msra.mxu0 %v600
        %1018 = vmatprep.subr.bf16.mxu0 %v599
        %1019 = vmatpush2.bf16.msra.mxu0 %v598
        %1020 = vmatprep.subr.bf16.mxu0 %v597
        %1021 = vmatpush2.bf16.msra.mxu0 %v596
        %1022 = vmatprep.subr.bf16.mxu0 %v595
        %1023 = vmatpush2.bf16.msra.mxu0 %v594
        %1024 = vmatprep.subr.bf16.mxu0 %v593
        %1025 = vmatpush2.bf16.msra.mxu0 %v592
        %1026 = vmatprep.subr.bf16.mxu0 %v591
        %1027 = vmatpush2.bf16.msra.mxu0 %v590
        %1028 = vmatprep.mubr.bf16.mxu0 %v719
        %1029 = vmatmul.mubr.bf16.gmra.mxu0 %v718
        %v1030 = vpop.f32.mrf.mxu0
        %v1031 = vadd.f32 %v988, %v1030
        %v1032 = vpop.f32.mrf.mxu0
        %v1033 = vadd.f32 %v990, %v1032
        %v1034 = vpop.f32.mrf.mxu0
        %v1035 = vadd.f32 %v992, %v1034
        %v1036 = vpop.f32.mrf.mxu0
        %v1037 = vadd.f32 %v994, %v1036
        %1038 = vdwg.mxu0
        %1039 = vmatprep.subr.bf16.mxu0 %v621
        %1040 = vmatpush1.bf16.msra.mxu0 %v620
        %1041 = vmatprep.subr.bf16.mxu0 %v619
        %1042 = vmatpush1.bf16.msra.mxu0 %v618
        %1043 = vmatprep.subr.bf16.mxu0 %v617
        %1044 = vmatpush1.bf16.msra.mxu0 %v616
        %1045 = vmatprep.subr.bf16.mxu0 %v615
        %1046 = vmatpush1.bf16.msra.mxu0 %v614
        %1047 = vmatprep.subr.bf16.mxu0 %v613
        %1048 = vmatpush1.bf16.msra.mxu0 %v612
        %1049 = vmatprep.subr.bf16.mxu0 %v611
        %1050 = vmatpush1.bf16.msra.mxu0 %v610
        %1051 = vmatprep.subr.bf16.mxu0 %v609
        %1052 = vmatpush1.bf16.msra.mxu0 %v608
        %1053 = vmatprep.subr.bf16.mxu0 %v607
        %1054 = vmatpush1.bf16.msra.mxu0 %v606
        %1055 = vmatprep.subr.bf16.mxu0 %v637
        %1056 = vmatpush2.bf16.msra.mxu0 %v636
        %1057 = vmatprep.subr.bf16.mxu0 %v635
        %1058 = vmatpush2.bf16.msra.mxu0 %v634
        %1059 = vmatprep.subr.bf16.mxu0 %v633
        %1060 = vmatpush2.bf16.msra.mxu0 %v632
        %1061 = vmatprep.subr.bf16.mxu0 %v631
        %1062 = vmatpush2.bf16.msra.mxu0 %v630
        %1063 = vmatprep.subr.bf16.mxu0 %v629
        %1064 = vmatpush2.bf16.msra.mxu0 %v628
        %1065 = vmatprep.subr.bf16.mxu0 %v627
        %1066 = vmatpush2.bf16.msra.mxu0 %v626
        %1067 = vmatprep.subr.bf16.mxu0 %v625
        %1068 = vmatpush2.bf16.msra.mxu0 %v624
        %1069 = vmatprep.subr.bf16.mxu0 %v623
        %1070 = vmatpush2.bf16.msra.mxu0 %v622
        %1071 = vmatprep.mubr.bf16.mxu0 %v721
        %1072 = vmatmul.mubr.bf16.gmra.mxu0 %v720
        %v1073 = vpop.f32.mrf.mxu0
        %v1074 = vadd.f32 %v1031, %v1073
        %v1075 = vpop.f32.mrf.mxu0
        %v1076 = vadd.f32 %v1033, %v1075
        %v1077 = vpop.f32.mrf.mxu0
        %v1078 = vadd.f32 %v1035, %v1077
        %v1079 = vpop.f32.mrf.mxu0
        %v1080 = vadd.f32 %v1037, %v1079
        %1081 = vdwg.mxu0
        %v1082 = vadd.f32 %v638, %v1074
        %v1083 = vadd.f32 %v639, %v1076
        %v1084 = vadd.f32 %v640, %v1078
        %v1085 = vadd.f32 %v641, %v1080
        %1086 = vst [vmem:[%s231] sm:$0xff] %v1082
        %1087 = vst [vmem:[%s231 + $0x8] sm:$0xff] %v1083
        %1088 = vst [vmem:[%s231 + $0x10] sm:$0xff] %v1084
        %1089 = vst [vmem:[%s231 + $0x18] sm:$0xff] %v1085
        // Predicated region
        $region41: #{network_forward.2} parent=31 // pred_check
          %p1090 = pneg %p246
        $region42: #{network_forward.2} parent=31 // pred_check_branch
          %1092 = sbr.rel (%p1090) target = $region44
        $region43: #{network_forward.2} parent=31 // pred_region
          %v1093 = vld [vmem:[%s231] sm:$0xff]
          %v1094 = vld [vmem:[%s231 + $0x8] sm:$0xff]
          %v1095 = vld [vmem:[%s231 + $0x10] sm:$0xff]
          %v1096 = vld [vmem:[%s231 + $0x18] sm:$0xff]
          %v1097 = vld [vmem:[%s243] sm:$0x3]
          %v1099 = vlaneseq
          %v1100 = vshrl.u32 %v1099, 7
          %v1101 = vsub.s32 0, %v1100
          %v1102 = vrot.slane %v1097, %v1101
          %v1103 = vlaneseq
          %v1104 = vshrl.u32 %v1103, 7
          %v1105 = vsub.s32 1, %v1104
          %v1106 = vrot.slane %v1097, %v1105
          %v1109 = vmul.f32 %v1093, %v1102
          %v1110 = vmul.f32 %v1094, %v1106
          %v1111 = vmul.f32 %v1095, %v1102
          %v1112 = vmul.f32 %v1096, %v1106
          %1113 = vst [vmem:[%s231] sm:$0xff] %v1109
          %1114 = vst [vmem:[%s231 + $0x8] sm:$0xff] %v1110
          %1115 = vst [vmem:[%s231 + $0x10] sm:$0xff] %v1111
          %1116 = vst [vmem:[%s231 + $0x18] sm:$0xff] %v1112
        $region44: #{network_forward.2} parent=31 // pred_fallthru
          _
        %s1117 = sand.u32 %s117, 1
        %s1118 = sand.u32 %s117, 1
        %s1119 = smul.addr %s1118, 32
        %s1120 = scalar_lea.vmem [#allocation4], %s1119
        // Predicated region
        $region45: #{network_forward.2} parent=31 // pred_check
          %p1121 = pneg %p127
        $region46: #{network_forward.2} parent=31 // pred_check_branch
          %1123 = sbr.rel (%p1121) target = $region48
        $region47: #{network_forward.2} parent=31 // pred_region
          %s1124 = smul.u32 2, %s21
          %s1125 = smul.addr %s1124, 8
          %s1126 = scalar_lea.vmem %s3, %s1125
          // Predicated region
          $region49: #{network_forward.2} parent=47 // pred_check
            _
          $region50: #{network_forward.2} parent=47 // pred_check_branch
            %1128 = sbr.rel (0) target = $region52
          $region51: #{network_forward.2} parent=47 // pred_region
            // Predicated region
            $region53: #{network_forward.2} parent=51 // pred_check
              _
            $region54: #{network_forward.2} parent=51 // pred_check_branch
              %1130 = sbr.rel (0) target = $region56
            $region55: #{network_forward.2} parent=51 // pred_region
              loop: start=0, step=1, limit=1
              $region57: #{network_forward.2} parent=55 // loop_pre_header
                _
              $region58: #{network_forward.2} parent=55 // loop_header
                %s1132 = sphi 0, %s1136
                %p1133 = scmp.ge.s32.totalorder %s1132, 1
                %s1137 = sphi %s1120, %s1120
                %s1138 = sphi %s1126, %s1126
              $region59: #{network_forward.2} parent=55 // loop_header_branch
                %1135 = sbr.rel (%p1133) target = $region63
              $region60: #{network_forward.2} parent=55 // loop_body
                %v1139 = vld [vmem:[%s1137] sm:$0xff]
                %1140 = vst [vmem:[%s1138] sm:$0xff] %v1139
                %v1141 = vld [vmem:[%s1137 + $0x8] sm:$0xff]
                %1142 = vst [vmem:[%s1138 + $0x8] sm:$0xff] %v1141
                %v1143 = vld [vmem:[%s1137 + $0x10] sm:$0xff]
                %1144 = vst [vmem:[%s1138 + $0x20] sm:$0xff] %v1143
                %v1145 = vld [vmem:[%s1137 + $0x18] sm:$0xff]
                %1146 = vst [vmem:[%s1138 + $0x28] sm:$0xff] %v1145
              $region61: #{network_forward.2} parent=55 // loop_footer
                %s1136 = sadd.s32 1, %s1132
              $region62: #{network_forward.2} parent=55 // loop_footer_branch
                %1131 = sbr.rel target = $region58
              $region63: #{network_forward.2} parent=55 // loop_exit
                _
            $region56: #{network_forward.2} parent=51 // pred_fallthru
              _
            // Predicated region
            $region64: #{network_forward.2} parent=51 // pred_check
              _
            $region65: #{network_forward.2} parent=51 // pred_check_branch
              %1148 = sbr.rel target = $region67
            $region66: #{network_forward.2} parent=51 // pred_region
              _
            $region67: #{network_forward.2} parent=51 // pred_fallthru
              _
          $region52: #{network_forward.2} parent=47 // pred_fallthru
            _
          %1149 = vnop
        $region48: #{network_forward.2} parent=31 // pred_fallthru
          _
      $region32: #{network_forward.2} parent=5 // pred_fallthru
        _
      %p1150 = scmp.le.s32.totalorder 2, %s12
      // Predicated region
      $region68: #{network_forward.2} parent=5 // pred_check
        %p1151 = pneg %p1150
      $region69: #{network_forward.2} parent=5 // pred_check_branch
        %1153 = sbr.rel (%p1151) target = $region71
      $region70: #{network_forward.2} parent=5 // pred_region
        %s1154 = ssub.s32 %s12, 2
        // Predicated region
        $region72: #{network_forward.2} parent=70 // pred_check
          %p1155 = pneg %p133
        $region73: #{network_forward.2} parent=70 // pred_check_branch
          %1157 = sbr.rel (%p1155) target = $region75
        $region74: #{network_forward.2} parent=70 // pred_region
          %s1158 = sand.u32 %s118, 1
          %s1159 = sand.u32 %s118, 1
          %s1160 = smul.addr %s1159, 32
          %s1161 = scalar_lea.vmem [#allocation4], %s1160
        $region75: #{network_forward.2} parent=70 // pred_fallthru
          _
      $region71: #{network_forward.2} parent=5 // pred_fallthru
        _
    $region6: #{network_forward.2} parent=1 // loop_footer
      %s16 = sadd.s32 1, %s12
    $region7: #{network_forward.2} parent=1 // loop_footer_branch
      %11 = sbr.rel target = $region3
    $region8: #{network_forward.2} parent=1 // loop_exit
      _
    %1162 = vsyncpa [#allocation3], 1
    %s1163 = scalar_lea.sflag [#allocation3], 1
    %1164 = vsyncpa %s1163, 1

// kernel: network_forward.3
$region0: #{network_forward.3}
  #allocation0 [shape = 'u32[]', space=smem, size = 0x4, offset = 0x4, fixed_abs, tag = 'smem constant byte address 0x4 - core index']
  #allocation1 [shape = 'u32[144,128]{1,0:T(1,128)}', space=vmem, size = 0x12000, scoped, tag = 'internal scratch']
  #allocation2 [shape = 'f32[8,512]{1,0:T(8,128)}', space=vmem, size = 0x4000, scoped, tag = 'scratch operand']
  #allocation3 [shape = 'f32[8,512]{1,0:T(8,128)}', space=vmem, size = 0x4000, scoped, tag = 'scratch operand']
  #allocation4 [shape = 'f32[8,128]{1,0:T(8,128)}', space=vmem, size = 0x1000, scoped, tag = 'scratch operand']
  %s0 = inlined_call_operand.vmem [shape: f32[8,8], index: 0, kind: input, shape index: {}]
  %s1 = inlined_call_operand.vmem [shape: f32[8,1], index: 1, kind: input, shape index: {}]
  %s2 = inlined_call_operand.vmem [shape: f32[2,8,512], index: 2, kind: input, shape index: {}]
  %s3 = inlined_call_operand.vmem [shape: f32[512,128], index: 3, kind: input, shape index: {}]
  %s4 = inlined_call_operand.vmem [shape: f32[2,8,128], index: 4, kind: output, shape index: {}]
  %s5 = sld [smem:[#allocation0]]
  $region49: #{network_forward.3} parent=0
    _
  %s7 = ssub.s32 1, %s5
  %s8 = scalar_select 0, %s7, %s5
  loop: start=0, step=1, limit=4
  $region2: #{network_forward.3} parent=0 // loop_pre_header
    _
  $region3: #{network_forward.3} parent=0 // loop_header
    %s10 = sphi 0, %s14
    %p11 = scmp.ge.s32.totalorder %s10, 4
    %s18 = sphi 0, %s18
    %s20 = sphi 0, %s18
    %s21 = sphi 0, %s20
    %s35 = sphi 0, %s21
    %s39 = sphi 0, %s39
    %s41 = sphi 0, %s39
    %s42 = sphi 0, %s41
    %s56 = sphi 0, %s42
    %s62 = sphi 0, %s64
    %s65 = sphi 0, %s62
    %s66 = sphi 0, %s65
    %s82 = sphi 0, %s66
    %s86 = sphi 0, %s86
    %s88 = sphi 0, %s86
    %s89 = sphi 0, %s88
    %s103 = sphi 0, %s89
    %s109 = sphi 0, %s111
    %s112 = sphi 0, %s109
    %s113 = sphi 0, %s112
    %s129 = sphi 0, %s113
  $region4: #{network_forward.3} parent=0 // loop_header_branch
    %13 = sbr.rel (%p11) target = $region8
  $region5: #{network_forward.3} parent=0 // loop_body
    %s15 = ssub.s32 %s10, 1
    %s16 = ssub.s32 %s10, 2
    %s17 = sadd.s32 %s10, 1
    %s19 = sadd.s32 %s18, 1
    %p22 = scmp.eq.s32.totalorder %s10, 1
    %p23 = scmp.ne.s32.totalorder %s18, %s20
    %p24 = scmp.eq.s32.totalorder %s10, 0
    %p25 = por %p23, %p24
    %p26 = scmp.ne.s32.totalorder %s18, %s20
    %p27 = scmp.eq.s32.totalorder %s15, 1
    %p28 = por %p26, %p27
    %p29 = scmp.ne.s32.totalorder %s20, %s21
    %p30 = scmp.eq.s32.totalorder %s15, 0
    %p31 = por %p29, %p30
    %p32 = scmp.ne.s32.totalorder %s20, %s21
    %p33 = scmp.eq.s32.totalorder %s16, 1
    %p34 = por %p32, %p33
    %p36 = scmp.ne.s32.totalorder %s21, %s35
    %p37 = scmp.eq.s32.totalorder %s16, 0
    %p38 = por %p36, %p37
    %s40 = sadd.s32 %s39, 1
    %p43 = scmp.eq.s32.totalorder %s10, 1
    %p44 = scmp.ne.s32.totalorder %s39, %s41
    %p45 = scmp.eq.s32.totalorder %s10, 0
    %p46 = por %p44, %p45
    %p47 = scmp.ne.s32.totalorder %s39, %s41
    %p48 = scmp.eq.s32.totalorder %s15, 1
    %p49 = por %p47, %p48
    %p50 = scmp.ne.s32.totalorder %s41, %s42
    %p51 = scmp.eq.s32.totalorder %s15, 0
    %p52 = por %p50, %p51
    %p53 = scmp.ne.s32.totalorder %s41, %s42
    %p54 = scmp.eq.s32.totalorder %s16, 1
    %p55 = por %p53, %p54
    %p57 = scmp.ne.s32.totalorder %s42, %s56
    %p58 = scmp.eq.s32.totalorder %s16, 0
    %p59 = por %p57, %p58
    %s60 = ssub.s32 %s10, %s17
    %p61 = scmp.eq.s32.totalorder %s60, 0
    %s63 = sadd.s32 %s62, 1
    %s64 = scalar_select %p61, %s62, %s63
    %p67 = pneg %p61
    %p68 = scmp.eq.s32.totalorder %s10, 1
    %p69 = por %p67, %p68
    %p70 = scmp.ne.s32.totalorder %s62, %s65
    %p71 = scmp.eq.s32.totalorder %s10, 0
    %p72 = por %p70, %p71
    %p73 = scmp.ne.s32.totalorder %s62, %s65
    %p74 = scmp.eq.s32.totalorder %s15, 1
    %p75 = por %p73, %p74
    %p76 = scmp.ne.s32.totalorder %s65, %s66
    %p77 = scmp.eq.s32.totalorder %s15, 0
    %p78 = por %p76, %p77
    %p79 = scmp.ne.s32.totalorder %s65, %s66
    %p80 = scmp.eq.s32.totalorder %s16, 1
    %p81 = por %p79, %p80
    %p83 = scmp.ne.s32.totalorder %s66, %s82
    %p84 = scmp.eq.s32.totalorder %s16, 0
    %p85 = por %p83, %p84
    %s87 = sadd.s32 %s86, 1
    %p90 = scmp.eq.s32.totalorder %s10, 1
    %p91 = scmp.ne.s32.totalorder %s86, %s88
    %p92 = scmp.eq.s32.totalorder %s10, 0
    %p93 = por %p91, %p92
    %p94 = scmp.ne.s32.totalorder %s86, %s88
    %p95 = scmp.eq.s32.totalorder %s15, 1
    %p96 = por %p94, %p95
    %p97 = scmp.ne.s32.totalorder %s88, %s89
    %p98 = scmp.eq.s32.totalorder %s15, 0
    %p99 = por %p97, %p98
    %p100 = scmp.ne.s32.totalorder %s88, %s89
    %p101 = scmp.eq.s32.totalorder %s16, 1
    %p102 = por %p100, %p101
    %p104 = scmp.ne.s32.totalorder %s89, %s103
    %p105 = scmp.eq.s32.totalorder %s16, 0
    %p106 = por %p104, %p105
    %s107 = ssub.s32 %s10, %s17
    %p108 = scmp.eq.s32.totalorder %s107, 0
    %s110 = sadd.s32 %s109, 1
    %s111 = scalar_select %p108, %s109, %s110
    %p114 = pneg %p108
    %p115 = scmp.eq.s32.totalorder %s10, 1
    %p116 = por %p114, %p115
    %p117 = scmp.ne.s32.totalorder %s109, %s112
    %p118 = scmp.eq.s32.totalorder %s10, 0
    %p119 = por %p117, %p118
    %p120 = scmp.ne.s32.totalorder %s109, %s112
    %p121 = scmp.eq.s32.totalorder %s15, 1
    %p122 = por %p120, %p121
    %p123 = scmp.ne.s32.totalorder %s112, %s113
    %p124 = scmp.eq.s32.totalorder %s15, 0
    %p125 = por %p123, %p124
    %p126 = scmp.ne.s32.totalorder %s112, %s113
    %p127 = scmp.eq.s32.totalorder %s16, 1
    %p128 = por %p126, %p127
    %p130 = scmp.ne.s32.totalorder %s113, %s129
    %p131 = scmp.eq.s32.totalorder %s16, 0
    %p132 = por %p130, %p131
    %p133 = scmp.le.s32.totalorder 1, %s10
    %p134 = scmp.lt.s32.totalorder %s10, 3
    %p135 = pnand %p133, %p134
    %p136 = pneg %p135
    // Predicated region
    $region9: #{network_forward.3} parent=5 // pred_check
      _
    $region10: #{network_forward.3} parent=5 // pred_check_branch
      %138 = sbr.rel (%p135) target = $region12
    $region11: #{network_forward.3} parent=5 // pred_region
      %s139 = ssub.s32 %s10, 1
      // Predicated region
      $region13: #{network_forward.3} parent=11 // pred_check
        %p140 = pneg %p31
      $region14: #{network_forward.3} parent=11 // pred_check_branch
        %142 = sbr.rel (%p140) target = $region16
      $region15: #{network_forward.3} parent=11 // pred_region
        _
      $region16: #{network_forward.3} parent=11 // pred_fallthru
        _
      // Predicated region
      $region17: #{network_forward.3} parent=11 // pred_check
        %p143 = pneg %p52
      $region18: #{network_forward.3} parent=11 // pred_check_branch
        %145 = sbr.rel (%p143) target = $region20
      $region19: #{network_forward.3} parent=11 // pred_region
        _
      $region20: #{network_forward.3} parent=11 // pred_fallthru
        _
      // Predicated region
      $region21: #{network_forward.3} parent=11 // pred_check
        %p146 = pneg %p99
      $region22: #{network_forward.3} parent=11 // pred_check_branch
        %148 = sbr.rel (%p146) target = $region24
      $region23: #{network_forward.3} parent=11 // pred_region
        _
      $region24: #{network_forward.3} parent=11 // pred_fallthru
        _
    $region12: #{network_forward.3} parent=5 // pred_fallthru
      _
    %p149 = scmp.lt.s32.totalorder %s10, 2
    // Predicated region
    $region25: #{network_forward.3} parent=5 // pred_check
      %p150 = pneg %p149
    $region26: #{network_forward.3} parent=5 // pred_check_branch
      %152 = sbr.rel (%p150) target = $region28
    $region27: #{network_forward.3} parent=5 // pred_region
      // Predicated region
      $region29: #{network_forward.3} parent=27 // pred_check
        %p153 = pneg %p72
      $region30: #{network_forward.3} parent=27 // pred_check_branch
        %155 = sbr.rel (%p153) target = $region32
      $region31: #{network_forward.3} parent=27 // pred_region
        %p156 = scmp.lt.s32.totalorder %s10, 1
        %s157 = scalar_select %p156, %s10, 1
        %s158 = smul.addr %s157, 4
        %s159 = smul.addr %s158, 8
        %s160 = scalar_lea.vmem %s2, %s159
      $region32: #{network_forward.3} parent=27 // pred_fallthru
        _
    $region28: #{network_forward.3} parent=5 // pred_fallthru
      _
    %p161 = scmp.le.s32.totalorder 1, %s10
    %p162 = scmp.lt.s32.totalorder %s10, 3
    %p163 = pnand %p161, %p162
    %p164 = pneg %p163
    // Predicated region
    $region33: #{network_forward.3} parent=5 // pred_check
      _
    $region34: #{network_forward.3} parent=5 // pred_check_branch
      %166 = sbr.rel (%p163) target = $region36
    $region35: #{network_forward.3} parent=5 // pred_region
      %s167 = ssub.s32 %s10, 1
      %p168 = pneg %p31
      %p169 = pneg %p28
      %p170 = pneg %p52
      %p171 = pneg %p49
      %p172 = scmp.lt.s32.totalorder %s15, 1
      %s173 = scalar_select %p172, %s15, 1
      %s174 = smul.addr %s173, 4
      %s175 = smul.addr %s174, 8
      %s176 = scalar_lea.vmem %s2, %s175
      %p177 = pneg %p78
      %p178 = pneg %p75
      %p179 = pneg %p99
      %p180 = pneg %p96
      %p181 = pneg %p125
      %p182 = pneg %p122
      %p183 = scmp.lt.s32.totalorder %s15, 1
      %s184 = scalar_select %p183, %s15, 1
      %s185 = smul.addr %s184, 8
      %s186 = scalar_lea.vmem %s4, %s185
      %p187 = scmp.lt.s32.totalorder %s15, 1
      %s188 = scalar_select %p187, %s15, 1
      %s189 = smul.addr %s188, 4
      %s190 = smul.addr %s189, 8
      %s191 = scalar_lea.vmem %s2, %s190
      %p192 = scmp.lt.s32.totalorder %s15, 1
      %s193 = scalar_select %p192, %s15, 1
      %s194 = smul.addr %s193, 8
      %s195 = scalar_lea.vmem %s4, %s194
      %v196 = vld [vmem:[%s1] sm:$0xff]
      %v197 = vld [vmem:[%s191] sm:$0xff]
      %v198 = vld [vmem:[%s191 + $0x8] sm:$0xff]
      %v199 = vld [vmem:[%s191 + $0x10] sm:$0xff]
      %v200 = vld [vmem:[%s191 + $0x18] sm:$0xff]
      %v201 = vld [vmem:[%s0] sm:$0xff]
      %vm202 = vcmask 64512
      %v204 = vsel %vm202, %v201, 0
      %206 = vmatprep.subr.mxu0 0.0
      %207 = vmatpush1.msra.mxu0 0.0
      %208 = vmatprep.subr.mxu0 0.0
      %209 = vmatpush1.msra.mxu0 0.0
      %210 = vmatprep.subr.mxu0 0.0
      %211 = vmatpush1.msra.mxu0 0.0
      %212 = vmatprep.subr.mxu0 0.0
      %213 = vmatpush1.msra.mxu0 0.0
      %214 = vmatprep.subr.mxu0 0.0
      %215 = vmatpush1.msra.mxu0 0.0
      %216 = vmatprep.subr.mxu0 0.0
      %217 = vmatpush1.msra.mxu0 0.0
      %218 = vmatprep.subr.mxu0 0.0
      %219 = vmatpush1.msra.mxu0 0.0
      %220 = vmatprep.subr.mxu0 0.0
      %221 = vmatpush1.msra.mxu0 0.0
      %222 = vmatprep.subr.mxu0 0.0
      %223 = vmatpush1.msra.mxu0 0.0
      %224 = vmatprep.subr.mxu0 0.0
      %225 = vmatpush1.msra.mxu0 0.0
      %226 = vmatprep.subr.mxu0 0.0
      %227 = vmatpush1.msra.mxu0 0.0
      %228 = vmatprep.subr.mxu0 0.0
      %229 = vmatpush1.msra.mxu0 0.0
      %230 = vmatprep.subr.mxu0 0.0
      %231 = vmatpush1.msra.mxu0 0.0
      %232 = vmatprep.subr.mxu0 0.0
      %233 = vmatpush1.msra.mxu0 0.0
      %234 = vmatprep.subr.mxu0 0.0
      %235 = vmatpush1.msra.mxu0 0.0
      %236 = vmatprep.subr.mxu0 %v198
      %237 = vmatpush1.msra.mxu0 %v197
      %238 = vmatprep.subr.mxu0 0.0
      %239 = vmatpush2.msra.mxu0 0.0
      %240 = vmatprep.subr.mxu0 0.0
      %241 = vmatpush2.msra.mxu0 0.0
      %242 = vmatprep.subr.mxu0 0.0
      %243 = vmatpush2.msra.mxu0 0.0
      %244 = vmatprep.subr.mxu0 0.0
      %245 = vmatpush2.msra.mxu0 0.0
      %246 = vmatprep.subr.mxu0 0.0
      %247 = vmatpush2.msra.mxu0 0.0
      %248 = vmatprep.subr.mxu0 0.0
      %249 = vmatpush2.msra.mxu0 0.0
      %250 = vmatprep.subr.mxu0 0.0
      %251 = vmatpush2.msra.mxu0 0.0
      %252 = vmatprep.subr.mxu0 0.0
      %253 = vmatpush2.msra.mxu0 0.0
      %254 = vmatprep.subr.mxu0 0.0
      %255 = vmatpush2.msra.mxu0 0.0
      %256 = vmatprep.subr.mxu0 0.0
      %257 = vmatpush2.msra.mxu0 0.0
      %258 = vmatprep.subr.mxu0 0.0
      %259 = vmatpush2.msra.mxu0 0.0
      %260 = vmatprep.subr.mxu0 0.0
      %261 = vmatpush2.msra.mxu0 0.0
      %262 = vmatprep.subr.mxu0 0.0
      %263 = vmatpush2.msra.mxu0 0.0
      %264 = vmatprep.subr.mxu0 0.0
      %265 = vmatpush2.msra.mxu0 0.0
      %266 = vmatprep.subr.mxu0 0.0
      %267 = vmatpush2.msra.mxu0 0.0
      %268 = vmatprep.subr.mxu0 0.0
      %269 = vmatpush2.msra.mxu0 0.0
      %270 = vmatprep.mubr.f32.mxu0 0.0
      %271 = vmatmul.mubr.f32.gmra.mxu0 %v204
      %v272 = vpop.f32.mrf.mxu0
      %v273 = vadd.f32 0.0, %v272
      %v274 = vpop.f32.mrf.mxu0
      %v275 = vadd.f32 0.0, %v274
      %276 = vdwg.mxu0
      %277 = vmatprep.subr.mxu0 0.0
      %278 = vmatpush1.msra.mxu0 0.0
      %279 = vmatprep.subr.mxu0 0.0
      %280 = vmatpush1.msra.mxu0 0.0
      %281 = vmatprep.subr.mxu0 0.0
      %282 = vmatpush1.msra.mxu0 0.0
      %283 = vmatprep.subr.mxu0 0.0
      %284 = vmatpush1.msra.mxu0 0.0
      %285 = vmatprep.subr.mxu0 0.0
      %286 = vmatpush1.msra.mxu0 0.0
      %287 = vmatprep.subr.mxu0 0.0
      %288 = vmatpush1.msra.mxu0 0.0
      %289 = vmatprep.subr.mxu0 0.0
      %290 = vmatpush1.msra.mxu0 0.0
      %291 = vmatprep.subr.mxu0 0.0
      %292 = vmatpush1.msra.mxu0 0.0
      %293 = vmatprep.subr.mxu0 0.0
      %294 = vmatpush1.msra.mxu0 0.0
      %295 = vmatprep.subr.mxu0 0.0
      %296 = vmatpush1.msra.mxu0 0.0
      %297 = vmatprep.subr.mxu0 0.0
      %298 = vmatpush1.msra.mxu0 0.0
      %299 = vmatprep.subr.mxu0 0.0
      %300 = vmatpush1.msra.mxu0 0.0
      %301 = vmatprep.subr.mxu0 0.0
      %302 = vmatpush1.msra.mxu0 0.0
      %303 = vmatprep.subr.mxu0 0.0
      %304 = vmatpush1.msra.mxu0 0.0
      %305 = vmatprep.subr.mxu0 0.0
      %306 = vmatpush1.msra.mxu0 0.0
      %307 = vmatprep.subr.mxu0 %v200
      %308 = vmatpush1.msra.mxu0 %v199
      %309 = vmatprep.subr.mxu0 0.0
      %310 = vmatpush2.msra.mxu0 0.0
      %311 = vmatprep.subr.mxu0 0.0
      %312 = vmatpush2.msra.mxu0 0.0
      %313 = vmatprep.subr.mxu0 0.0
      %314 = vmatpush2.msra.mxu0 0.0
      %315 = vmatprep.subr.mxu0 0.0
      %316 = vmatpush2.msra.mxu0 0.0
      %317 = vmatprep.subr.mxu0 0.0
      %318 = vmatpush2.msra.mxu0 0.0
      %319 = vmatprep.subr.mxu0 0.0
      %320 = vmatpush2.msra.mxu0 0.0
      %321 = vmatprep.subr.mxu0 0.0
      %322 = vmatpush2.msra.mxu0 0.0
      %323 = vmatprep.subr.mxu0 0.0
      %324 = vmatpush2.msra.mxu0 0.0
      %325 = vmatprep.subr.mxu0 0.0
      %326 = vmatpush2.msra.mxu0 0.0
      %327 = vmatprep.subr.mxu0 0.0
      %328 = vmatpush2.msra.mxu0 0.0
      %329 = vmatprep.subr.mxu0 0.0
      %330 = vmatpush2.msra.mxu0 0.0
      %331 = vmatprep.subr.mxu0 0.0
      %332 = vmatpush2.msra.mxu0 0.0
      %333 = vmatprep.subr.mxu0 0.0
      %334 = vmatpush2.msra.mxu0 0.0
      %335 = vmatprep.subr.mxu0 0.0
      %336 = vmatpush2.msra.mxu0 0.0
      %337 = vmatprep.subr.mxu0 0.0
      %338 = vmatpush2.msra.mxu0 0.0
      %339 = vmatprep.subr.mxu0 0.0
      %340 = vmatpush2.msra.mxu0 0.0
      %341 = vmatprep.mubr.f32.mxu0 0.0
      %342 = vmatmul.mubr.f32.gmra.mxu0 %v204
      %v343 = vpop.f32.mrf.mxu0
      %v344 = vadd.f32 0.0, %v343
      %v345 = vpop.f32.mrf.mxu0
      %v346 = vadd.f32 0.0, %v345
      %347 = vdwg.mxu0
      %348 = vst [vmem:[#allocation2] sm:$0xff] %v273
      %349 = vst [vmem:[#allocation2 + $0x8] sm:$0xff] %v275
      %350 = vst [vmem:[#allocation2 + $0x10] sm:$0xff] %v344
      %351 = vst [vmem:[#allocation2 + $0x18] sm:$0xff] %v346
      %v352 = vld [vmem:[#allocation2] ss:$8 sm:$0xf]
      %vm353 = vcmp.ge.f32.partialorder %v352, 10.0
      %v354 = vsel %vm353, 1, 0
      %v355 = vcvt.s32.f32 %v354
      %v356 = vlaneseq
      %vm357 = vcmp.ge.s32.totalorder %v356, 0
      %vm358 = vcmp.lt.s32.totalorder %v356, 512
      %vm359 = vmand %vm357, %vm358
      %360 = vst.msk [vmem:[#allocation3] ss:$8 sm:$0xf] %vm359, %v355
      %361 = vst.msk [vmem:[#allocation3] ss:$8 sm:$0x0] %vm359, %v355
      %v362 = vld [vmem:[#allocation2] sm:$0xfe]
      %v363 = vld [vmem:[#allocation2 + $0x8] sm:$0xfe]
      %v364 = vld [vmem:[#allocation2 + $0x10] sm:$0xfe]
      %v365 = vld [vmem:[#allocation2 + $0x18] sm:$0xfe]
      %367 = vset.pattern.permute.xlu0 0
      %368 = vperm.xlu0 %367, %v196
      %v369 = vpop.permute.xlu0 %368
      %v372 = vlaneseq
      %v373 = vshrl.u32 %v372, 7
      %v374 = vsub.s32 0, %v373
      %v375 = vrot.slane %v355, %v374
      %v376 = vlaneseq
      %v377 = vshrl.u32 %v376, 7
      %v378 = vsub.s32 1, %v377
      %v379 = vrot.slane %v355, %v378
      %v380 = vlaneseq
      %v381 = vshrl.u32 %v380, 7
      %v382 = vsub.s32 2, %v381
      %v383 = vrot.slane %v355, %v382
      %v384 = vlaneseq
      %v385 = vshrl.u32 %v384, 7
      %v386 = vsub.s32 3, %v385
      %v387 = vrot.slane %v355, %v386
      %v392 = vmul.f32 %v369, %v375
      %v393 = vmul.f32 %v369, %v379
      %v394 = vmul.f32 %v369, %v383
      %v395 = vmul.f32 %v369, %v387
      %v396 = vadd.f32 %v362, %v392
      %v397 = vadd.f32 %v363, %v393
      %v398 = vadd.f32 %v364, %v394
      %v399 = vadd.f32 %v365, %v395
      %400 = vst [vmem:[#allocation2] sm:$0xfe] %v396
      %401 = vst [vmem:[#allocation2 + $0x8] sm:$0xfe] %v397
      %402 = vst [vmem:[#allocation2 + $0x10] sm:$0xfe] %v398
      %403 = vst [vmem:[#allocation2 + $0x18] sm:$0xfe] %v399
      %s404 = scalar_lea.vmem [#allocation2], 1
      %v405 = vld [vmem:[%s404] ss:$8 sm:$0xf]
      %vm406 = vcmp.ge.f32.partialorder %v405, 10.0
      %v407 = vsel %vm406, 1, 0
      %v408 = vcvt.s32.f32 %v407
      %s409 = scalar_lea.vmem [#allocation3], 1
      %410 = vst.msk [vmem:[%s409] ss:$8 sm:$0xf] %vm359, %v408
      %411 = vst.msk [vmem:[%s409] ss:$8 sm:$0x0] %vm359, %v408
      %v412 = vld [vmem:[#allocation2] sm:$0xfc]
      %v413 = vld [vmem:[#allocation2 + $0x8] sm:$0xfc]
      %v414 = vld [vmem:[#allocation2 + $0x10] sm:$0xfc]
      %v415 = vld [vmem:[#allocation2 + $0x18] sm:$0xfc]
      %v417 = vlaneseq
      %v418 = vshrl.u32 %v417, 7
      %v419 = vsub.s32 0, %v418
      %v420 = vrot.slane %v408, %v419
      %v421 = vlaneseq
      %v422 = vshrl.u32 %v421, 7
      %v423 = vsub.s32 1, %v422
      %v424 = vrot.slane %v408, %v423
      %v425 = vlaneseq
      %v426 = vshrl.u32 %v425, 7
      %v427 = vsub.s32 2, %v426
      %v428 = vrot.slane %v408, %v427
      %v429 = vlaneseq
      %v430 = vshrl.u32 %v429, 7
      %v431 = vsub.s32 3, %v430
      %v432 = vrot.slane %v408, %v431
      %v437 = vmul.f32 %v369, %v420
      %v438 = vmul.f32 %v369, %v424
      %v439 = vmul.f32 %v369, %v428
      %v440 = vmul.f32 %v369, %v432
      %v445 = vrot.slane %v437, 7
      %v446 = vrot.slane %v438, 7
      %v447 = vrot.slane %v439, 7
      %v448 = vrot.slane %v440, 7
      %v453 = vadd.f32 %v412, %v445
      %v454 = vadd.f32 %v413, %v446
      %v455 = vadd.f32 %v414, %v447
      %v456 = vadd.f32 %v415, %v448
      %457 = vst [vmem:[#allocation2] sm:$0xfc] %v453
      %458 = vst [vmem:[#allocation2 + $0x8] sm:$0xfc] %v454
      %459 = vst [vmem:[#allocation2 + $0x10] sm:$0xfc] %v455
      %460 = vst [vmem:[#allocation2 + $0x18] sm:$0xfc] %v456
      %s461 = scalar_lea.vmem [#allocation2], 2
      %v462 = vld [vmem:[%s461] ss:$8 sm:$0xf]
      %vm463 = vcmp.ge.f32.partialorder %v462, 10.0
      %v464 = vsel %vm463, 1, 0
      %v465 = vcvt.s32.f32 %v464
      %s466 = scalar_lea.vmem [#allocation3], 2
      %467 = vst.msk [vmem:[%s466] ss:$8 sm:$0xf] %vm359, %v465
      %468 = vst.msk [vmem:[%s466] ss:$8 sm:$0x0] %vm359, %v465
      %v469 = vld [vmem:[#allocation2] sm:$0xf8]
      %v470 = vld [vmem:[#allocation2 + $0x8] sm:$0xf8]
      %v471 = vld [vmem:[#allocation2 + $0x10] sm:$0xf8]
      %v472 = vld [vmem:[#allocation2 + $0x18] sm:$0xf8]
      %v474 = vlaneseq
      %v475 = vshrl.u32 %v474, 7
      %v476 = vsub.s32 0, %v475
      %v477 = vrot.slane %v465, %v476
      %v478 = vlaneseq
      %v479 = vshrl.u32 %v478, 7
      %v480 = vsub.s32 1, %v479
      %v481 = vrot.slane %v465, %v480
      %v482 = vlaneseq
      %v483 = vshrl.u32 %v482, 7
      %v484 = vsub.s32 2, %v483
      %v485 = vrot.slane %v465, %v484
      %v486 = vlaneseq
      %v487 = vshrl.u32 %v486, 7
      %v488 = vsub.s32 3, %v487
      %v489 = vrot.slane %v465, %v488
      %v494 = vmul.f32 %v369, %v477
      %v495 = vmul.f32 %v369, %v481
      %v496 = vmul.f32 %v369, %v485
      %v497 = vmul.f32 %v369, %v489
      %v502 = vrot.slane %v494, 6
      %v503 = vrot.slane %v495, 6
      %v504 = vrot.slane %v496, 6
      %v505 = vrot.slane %v497, 6
      %v510 = vadd.f32 %v469, %v502
      %v511 = vadd.f32 %v470, %v503
      %v512 = vadd.f32 %v471, %v504
      %v513 = vadd.f32 %v472, %v505
      %514 = vst [vmem:[#allocation2] sm:$0xf8] %v510
      %515 = vst [vmem:[#allocation2 + $0x8] sm:$0xf8] %v511
      %516 = vst [vmem:[#allocation2 + $0x10] sm:$0xf8] %v512
      %517 = vst [vmem:[#allocation2 + $0x18] sm:$0xf8] %v513
      %s518 = scalar_lea.vmem [#allocation2], 3
      %v519 = vld [vmem:[%s518] ss:$8 sm:$0xf]
      %vm520 = vcmp.ge.f32.partialorder %v519, 10.0
      %v521 = vsel %vm520, 1, 0
      %v522 = vcvt.s32.f32 %v521
      %s523 = scalar_lea.vmem [#allocation3], 3
      %524 = vst.msk [vmem:[%s523] ss:$8 sm:$0xf] %vm359, %v522
      %525 = vst.msk [vmem:[%s523] ss:$8 sm:$0x0] %vm359, %v522
      %v526 = vld [vmem:[#allocation2] sm:$0xf0]
      %v527 = vld [vmem:[#allocation2 + $0x8] sm:$0xf0]
      %v528 = vld [vmem:[#allocation2 + $0x10] sm:$0xf0]
      %v529 = vld [vmem:[#allocation2 + $0x18] sm:$0xf0]
      %v531 = vlaneseq
      %v532 = vshrl.u32 %v531, 7
      %v533 = vsub.s32 0, %v532
      %v534 = vrot.slane %v522, %v533
      %v535 = vlaneseq
      %v536 = vshrl.u32 %v535, 7
      %v537 = vsub.s32 1, %v536
      %v538 = vrot.slane %v522, %v537
      %v539 = vlaneseq
      %v540 = vshrl.u32 %v539, 7
      %v541 = vsub.s32 2, %v540
      %v542 = vrot.slane %v522, %v541
      %v543 = vlaneseq
      %v544 = vshrl.u32 %v543, 7
      %v545 = vsub.s32 3, %v544
      %v546 = vrot.slane %v522, %v545
      %v551 = vmul.f32 %v369, %v534
      %v552 = vmul.f32 %v369, %v538
      %v553 = vmul.f32 %v369, %v542
      %v554 = vmul.f32 %v369, %v546
      %v559 = vrot.slane %v551, 5
      %v560 = vrot.slane %v552, 5
      %v561 = vrot.slane %v553, 5
      %v562 = vrot.slane %v554, 5
      %v567 = vadd.f32 %v526, %v559
      %v568 = vadd.f32 %v527, %v560
      %v569 = vadd.f32 %v528, %v561
      %v570 = vadd.f32 %v529, %v562
      %571 = vst [vmem:[#allocation2] sm:$0xf0] %v567
      %572 = vst [vmem:[#allocation2 + $0x8] sm:$0xf0] %v568
      %573 = vst [vmem:[#allocation2 + $0x10] sm:$0xf0] %v569
      %574 = vst [vmem:[#allocation2 + $0x18] sm:$0xf0] %v570
      %s575 = scalar_lea.vmem [#allocation2], 4
      %v576 = vld [vmem:[%s575] ss:$8 sm:$0xf]
      %vm577 = vcmp.ge.f32.partialorder %v576, 10.0
      %v578 = vsel %vm577, 1, 0
      %v579 = vcvt.s32.f32 %v578
      %s580 = scalar_lea.vmem [#allocation3], 4
      %581 = vst.msk [vmem:[%s580] ss:$8 sm:$0xf] %vm359, %v579
      %582 = vst.msk [vmem:[%s580] ss:$8 sm:$0x0] %vm359, %v579
      %v583 = vld [vmem:[#allocation2] sm:$0xe0]
      %v584 = vld [vmem:[#allocation2 + $0x8] sm:$0xe0]
      %v585 = vld [vmem:[#allocation2 + $0x10] sm:$0xe0]
      %v586 = vld [vmem:[#allocation2 + $0x18] sm:$0xe0]
      %v588 = vlaneseq
      %v589 = vshrl.u32 %v588, 7
      %v590 = vsub.s32 0, %v589
      %v591 = vrot.slane %v579, %v590
      %v592 = vlaneseq
      %v593 = vshrl.u32 %v592, 7
      %v594 = vsub.s32 1, %v593
      %v595 = vrot.slane %v579, %v594
      %v596 = vlaneseq
      %v597 = vshrl.u32 %v596, 7
      %v598 = vsub.s32 2, %v597
      %v599 = vrot.slane %v579, %v598
      %v600 = vlaneseq
      %v601 = vshrl.u32 %v600, 7
      %v602 = vsub.s32 3, %v601
      %v603 = vrot.slane %v579, %v602
      %v608 = vmul.f32 %v369, %v591
      %v609 = vmul.f32 %v369, %v595
      %v610 = vmul.f32 %v369, %v599
      %v611 = vmul.f32 %v369, %v603
      %v616 = vrot.slane %v608, 4
      %v617 = vrot.slane %v609, 4
      %v618 = vrot.slane %v610, 4
      %v619 = vrot.slane %v611, 4
      %v624 = vadd.f32 %v583, %v616
      %v625 = vadd.f32 %v584, %v617
      %v626 = vadd.f32 %v585, %v618
      %v627 = vadd.f32 %v586, %v619
      %628 = vst [vmem:[#allocation2] sm:$0xe0] %v624
      %629 = vst [vmem:[#allocation2 + $0x8] sm:$0xe0] %v625
      %630 = vst [vmem:[#allocation2 + $0x10] sm:$0xe0] %v626
      %631 = vst [vmem:[#allocation2 + $0x18] sm:$0xe0] %v627
      %s632 = scalar_lea.vmem [#allocation2], 5
      %v633 = vld [vmem:[%s632] ss:$8 sm:$0xf]
      %vm634 = vcmp.ge.f32.partialorder %v633, 10.0
      %v635 = vsel %vm634, 1, 0
      %v636 = vcvt.s32.f32 %v635
      %s637 = scalar_lea.vmem [#allocation3], 5
      %638 = vst.msk [vmem:[%s637] ss:$8 sm:$0xf] %vm359, %v636
      %639 = vst.msk [vmem:[%s637] ss:$8 sm:$0x0] %vm359, %v636
      %v640 = vld [vmem:[#allocation2] sm:$0xc0]
      %v641 = vld [vmem:[#allocation2 + $0x8] sm:$0xc0]
      %v642 = vld [vmem:[#allocation2 + $0x10] sm:$0xc0]
      %v643 = vld [vmem:[#allocation2 + $0x18] sm:$0xc0]
      %v645 = vlaneseq
      %v646 = vshrl.u32 %v645, 7
      %v647 = vsub.s32 0, %v646
      %v648 = vrot.slane %v636, %v647
      %v649 = vlaneseq
      %v650 = vshrl.u32 %v649, 7
      %v651 = vsub.s32 1, %v650
      %v652 = vrot.slane %v636, %v651
      %v653 = vlaneseq
      %v654 = vshrl.u32 %v653, 7
      %v655 = vsub.s32 2, %v654
      %v656 = vrot.slane %v636, %v655
      %v657 = vlaneseq
      %v658 = vshrl.u32 %v657, 7
      %v659 = vsub.s32 3, %v658
      %v660 = vrot.slane %v636, %v659
      %v665 = vmul.f32 %v369, %v648
      %v666 = vmul.f32 %v369, %v652
      %v667 = vmul.f32 %v369, %v656
      %v668 = vmul.f32 %v369, %v660
      %v673 = vrot.slane %v665, 3
      %v674 = vrot.slane %v666, 3
      %v675 = vrot.slane %v667, 3
      %v676 = vrot.slane %v668, 3
      %v681 = vadd.f32 %v640, %v673
      %v682 = vadd.f32 %v641, %v674
      %v683 = vadd.f32 %v642, %v675
      %v684 = vadd.f32 %v643, %v676
      %685 = vst [vmem:[#allocation2] sm:$0xc0] %v681
      %686 = vst [vmem:[#allocation2 + $0x8] sm:$0xc0] %v682
      %687 = vst [vmem:[#allocation2 + $0x10] sm:$0xc0] %v683
      %688 = vst [vmem:[#allocation2 + $0x18] sm:$0xc0] %v684
      %s689 = scalar_lea.vmem [#allocation2], 6
      %v690 = vld [vmem:[%s689] ss:$8 sm:$0xf]
      %vm691 = vcmp.ge.f32.partialorder %v690, 10.0
      %v692 = vsel %vm691, 1, 0
      %v693 = vcvt.s32.f32 %v692
      %s694 = scalar_lea.vmem [#allocation3], 6
      %695 = vst.msk [vmem:[%s694] ss:$8 sm:$0xf] %vm359, %v693
      %696 = vst.msk [vmem:[%s694] ss:$8 sm:$0x0] %vm359, %v693
      %s697 = scalar_lea.vmem [#allocation2], 7
      %v698 = vld [vmem:[%s697] ss:$8 sm:$0xf]
      %v700 = vlaneseq
      %v701 = vshrl.u32 %v700, 7
      %v702 = vsub.s32 0, %v701
      %v703 = vrot.slane %v693, %v702
      %v704 = vlaneseq
      %v705 = vshrl.u32 %v704, 7
      %v706 = vsub.s32 1, %v705
      %v707 = vrot.slane %v693, %v706
      %v708 = vlaneseq
      %v709 = vshrl.u32 %v708, 7
      %v710 = vsub.s32 2, %v709
      %v711 = vrot.slane %v693, %v710
      %v712 = vlaneseq
      %v713 = vshrl.u32 %v712, 7
      %v714 = vsub.s32 3, %v713
      %v715 = vrot.slane %v693, %v714
      %v720 = vmul.f32 %v369, %v703
      %v721 = vmul.f32 %v369, %v707
      %v722 = vmul.f32 %v369, %v711
      %v723 = vmul.f32 %v369, %v715
      %v728 = vcombine.low %v720, %v721
      %v729 = vcombine.low %v722, %v723
      %v731 = vunpack.c.l.s4 1966171168
      %v732 = vunpack.c.0.s8 %v731
      %v733 = vlaneseq
      %v734 = vshrl.u32 %v733, 7
      %v735 = vsub.s32 %v732, %v734
      %v736 = vrot.slane %v728, %v735
      %v738 = vunpack.c.l.s4 1966171168
      %v739 = vunpack.c.0.s8 %v738
      %v740 = vlaneseq
      %v741 = vshrl.u32 %v740, 7
      %v742 = vsub.s32 %v739, %v741
      %v743 = vrot.slane %v729, %v742
      %v744 = vcombine.high %v736, %v743
      %v746 = vunpack.c.l.s4 1966171168
      %v747 = vunpack.c.0.s8 %v746
      %v748 = vlaneseq
      %v749 = vshrl.u32 %v748, 7
      %v750 = vsub.s32 %v747, %v749
      %v751 = vrot.slane %v744, %v750
      %v753 = vadd.f32 %v698, %v751
      %754 = vst.msk [vmem:[%s697] ss:$8 sm:$0xf] %vm359, %v753
      %755 = vst.msk [vmem:[%s697] ss:$8 sm:$0x0] %vm359, %v753
      %v756 = vld [vmem:[%s697] ss:$8 sm:$0xf]
      %vm757 = vcmp.ge.f32.partialorder %v756, 10.0
      %v758 = vsel %vm757, 1, 0
      %v759 = vcvt.s32.f32 %v758
      %s760 = scalar_lea.vmem [#allocation3], 7
      %761 = vst.msk [vmem:[%s760] ss:$8 sm:$0xf] %vm359, %v759
      %762 = vst.msk [vmem:[%s760] ss:$8 sm:$0x0] %vm359, %v759
      %v763 = vld [vmem:[#allocation3] sm:$0xff]
      %v764 = vld [vmem:[#allocation3 + $0x8] sm:$0xff]
      %v765 = vld [vmem:[#allocation3 + $0x10] sm:$0xff]
      %v766 = vld [vmem:[#allocation3 + $0x18] sm:$0xff]
      %v767 = vld [vmem:[%s3] sm:$0xff]
      %v768 = vld [vmem:[%s3 + $0x8] sm:$0xff]
      %v769 = vld [vmem:[%s3 + $0x10] sm:$0xff]
      %v770 = vld [vmem:[%s3 + $0x18] sm:$0xff]
      %v771 = vld [vmem:[%s3 + $0x20] sm:$0xff]
      %v772 = vld [vmem:[%s3 + $0x28] sm:$0xff]
      %v773 = vld [vmem:[%s3 + $0x30] sm:$0xff]
      %v774 = vld [vmem:[%s3 + $0x38] sm:$0xff]
      %v775 = vld [vmem:[%s3 + $0x40] sm:$0xff]
      %v776 = vld [vmem:[%s3 + $0x48] sm:$0xff]
      %v777 = vld [vmem:[%s3 + $0x50] sm:$0xff]
      %v778 = vld [vmem:[%s3 + $0x58] sm:$0xff]
      %v779 = vld [vmem:[%s3 + $0x60] sm:$0xff]
      %v780 = vld [vmem:[%s3 + $0x68] sm:$0xff]
      %v781 = vld [vmem:[%s3 + $0x70] sm:$0xff]
      %v782 = vld [vmem:[%s3 + $0x78] sm:$0xff]
      %v783 = vld [vmem:[%s3 + $0x80] sm:$0xff]
      %v784 = vld [vmem:[%s3 + $0x88] sm:$0xff]
      %v785 = vld [vmem:[%s3 + $0x90] sm:$0xff]
      %v786 = vld [vmem:[%s3 + $0x98] sm:$0xff]
      %v787 = vld [vmem:[%s3 + $0xa0] sm:$0xff]
      %v788 = vld [vmem:[%s3 + $0xa8] sm:$0xff]
      %v789 = vld [vmem:[%s3 + $0xb0] sm:$0xff]
      %v790 = vld [vmem:[%s3 + $0xb8] sm:$0xff]
      %v791 = vld [vmem:[%s3 + $0xc0] sm:$0xff]
      %v792 = vld [vmem:[%s3 + $0xc8] sm:$0xff]
      %v793 = vld [vmem:[%s3 + $0xd0] sm:$0xff]
      %v794 = vld [vmem:[%s3 + $0xd8] sm:$0xff]
      %v795 = vld [vmem:[%s3 + $0xe0] sm:$0xff]
      %v796 = vld [vmem:[%s3 + $0xe8] sm:$0xff]
      %v797 = vld [vmem:[%s3 + $0xf0] sm:$0xff]
      %v798 = vld [vmem:[%s3 + $0xf8] sm:$0xff]
      %v799 = vld [vmem:[%s3 + $0x100] sm:$0xff]
      %v800 = vld [vmem:[%s3 + $0x108] sm:$0xff]
      %v801 = vld [vmem:[%s3 + $0x110] sm:$0xff]
      %v802 = vld [vmem:[%s3 + $0x118] sm:$0xff]
      %v803 = vld [vmem:[%s3 + $0x120] sm:$0xff]
      %v804 = vld [vmem:[%s3 + $0x128] sm:$0xff]
      %v805 = vld [vmem:[%s3 + $0x130] sm:$0xff]
      %v806 = vld [vmem:[%s3 + $0x138] sm:$0xff]
      %v807 = vld [vmem:[%s3 + $0x140] sm:$0xff]
      %v808 = vld [vmem:[%s3 + $0x148] sm:$0xff]
      %v809 = vld [vmem:[%s3 + $0x150] sm:$0xff]
      %v810 = vld [vmem:[%s3 + $0x158] sm:$0xff]
      %v811 = vld [vmem:[%s3 + $0x160] sm:$0xff]
      %v812 = vld [vmem:[%s3 + $0x168] sm:$0xff]
      %v813 = vld [vmem:[%s3 + $0x170] sm:$0xff]
      %v814 = vld [vmem:[%s3 + $0x178] sm:$0xff]
      %v815 = vld [vmem:[%s3 + $0x180] sm:$0xff]
      %v816 = vld [vmem:[%s3 + $0x188] sm:$0xff]
      %v817 = vld [vmem:[%s3 + $0x190] sm:$0xff]
      %v818 = vld [vmem:[%s3 + $0x198] sm:$0xff]
      %v819 = vld [vmem:[%s3 + $0x1a0] sm:$0xff]
      %v820 = vld [vmem:[%s3 + $0x1a8] sm:$0xff]
      %v821 = vld [vmem:[%s3 + $0x1b0] sm:$0xff]
      %v822 = vld [vmem:[%s3 + $0x1b8] sm:$0xff]
      %v823 = vld [vmem:[%s3 + $0x1c0] sm:$0xff]
      %v824 = vld [vmem:[%s3 + $0x1c8] sm:$0xff]
      %v825 = vld [vmem:[%s3 + $0x1d0] sm:$0xff]
      %v826 = vld [vmem:[%s3 + $0x1d8] sm:$0xff]
      %v827 = vld [vmem:[%s3 + $0x1e0] sm:$0xff]
      %v828 = vld [vmem:[%s3 + $0x1e8] sm:$0xff]
      %v829 = vld [vmem:[%s3 + $0x1f0] sm:$0xff]
      %v830 = vld [vmem:[%s3 + $0x1f8] sm:$0xff]
      %831 = vmatprep.subr.mxu0 0.0
      %832 = vmatpush1.msra.mxu0 %v782
      %833 = vmatprep.subr.mxu0 0.0
      %834 = vmatpush1.msra.mxu0 %v781
      %835 = vmatprep.subr.mxu0 0.0
      %836 = vmatpush1.msra.mxu0 %v780
      %837 = vmatprep.subr.mxu0 0.0
      %838 = vmatpush1.msra.mxu0 %v779
      %839 = vmatprep.subr.mxu0 0.0
      %840 = vmatpush1.msra.mxu0 %v778
      %841 = vmatprep.subr.mxu0 0.0
      %842 = vmatpush1.msra.mxu0 %v777
      %843 = vmatprep.subr.mxu0 0.0
      %844 = vmatpush1.msra.mxu0 %v776
      %845 = vmatprep.subr.mxu0 0.0
      %846 = vmatpush1.msra.mxu0 %v775
      %847 = vmatprep.subr.mxu0 0.0
      %848 = vmatpush1.msra.mxu0 %v774
      %849 = vmatprep.subr.mxu0 0.0
      %850 = vmatpush1.msra.mxu0 %v773
      %851 = vmatprep.subr.mxu0 0.0
      %852 = vmatpush1.msra.mxu0 %v772
      %853 = vmatprep.subr.mxu0 0.0
      %854 = vmatpush1.msra.mxu0 %v771
      %855 = vmatprep.subr.mxu0 0.0
      %856 = vmatpush1.msra.mxu0 %v770
      %857 = vmatprep.subr.mxu0 0.0
      %858 = vmatpush1.msra.mxu0 %v769
      %859 = vmatprep.subr.mxu0 0.0
      %860 = vmatpush1.msra.mxu0 %v768
      %861 = vmatprep.subr.mxu0 0.0
      %862 = vmatpush1.msra.mxu0 %v767
      %863 = vmatprep.subr.mxu0 0.0
      %864 = vmatpush2.msra.mxu0 %v798
      %865 = vmatprep.subr.mxu0 0.0
      %866 = vmatpush2.msra.mxu0 %v797
      %867 = vmatprep.subr.mxu0 0.0
      %868 = vmatpush2.msra.mxu0 %v796
      %869 = vmatprep.subr.mxu0 0.0
      %870 = vmatpush2.msra.mxu0 %v795
      %871 = vmatprep.subr.mxu0 0.0
      %872 = vmatpush2.msra.mxu0 %v794
      %873 = vmatprep.subr.mxu0 0.0
      %874 = vmatpush2.msra.mxu0 %v793
      %875 = vmatprep.subr.mxu0 0.0
      %876 = vmatpush2.msra.mxu0 %v792
      %877 = vmatprep.subr.mxu0 0.0
      %878 = vmatpush2.msra.mxu0 %v791
      %879 = vmatprep.subr.mxu0 0.0
      %880 = vmatpush2.msra.mxu0 %v790
      %881 = vmatprep.subr.mxu0 0.0
      %882 = vmatpush2.msra.mxu0 %v789
      %883 = vmatprep.subr.mxu0 0.0
      %884 = vmatpush2.msra.mxu0 %v788
      %885 = vmatprep.subr.mxu0 0.0
      %886 = vmatpush2.msra.mxu0 %v787
      %887 = vmatprep.subr.mxu0 0.0
      %888 = vmatpush2.msra.mxu0 %v786
      %889 = vmatprep.subr.mxu0 0.0
      %890 = vmatpush2.msra.mxu0 %v785
      %891 = vmatprep.subr.mxu0 0.0
      %892 = vmatpush2.msra.mxu0 %v784
      %893 = vmatprep.subr.mxu0 0.0
      %894 = vmatpush2.msra.mxu0 %v783
      %895 = vmatprep.mubr.f32.mxu0 %v764
      %896 = vmatmul.mubr.f32.gmra.mxu0 %v763
      %v897 = vpop.f32.mrf.mxu0
      %v898 = vadd.f32 0.0, %v897
      %v899 = vpop.f32.mrf.mxu0
      %900 = vdwg.mxu0
      %901 = vmatprep.subr.mxu0 0.0
      %902 = vmatpush1.msra.mxu0 %v814
      %903 = vmatprep.subr.mxu0 0.0
      %904 = vmatpush1.msra.mxu0 %v813
      %905 = vmatprep.subr.mxu0 0.0
      %906 = vmatpush1.msra.mxu0 %v812
      %907 = vmatprep.subr.mxu0 0.0
      %908 = vmatpush1.msra.mxu0 %v811
      %909 = vmatprep.subr.mxu0 0.0
      %910 = vmatpush1.msra.mxu0 %v810
      %911 = vmatprep.subr.mxu0 0.0
      %912 = vmatpush1.msra.mxu0 %v809
      %913 = vmatprep.subr.mxu0 0.0
      %914 = vmatpush1.msra.mxu0 %v808
      %915 = vmatprep.subr.mxu0 0.0
      %916 = vmatpush1.msra.mxu0 %v807
      %917 = vmatprep.subr.mxu0 0.0
      %918 = vmatpush1.msra.mxu0 %v806
      %919 = vmatprep.subr.mxu0 0.0
      %920 = vmatpush1.msra.mxu0 %v805
      %921 = vmatprep.subr.mxu0 0.0
      %922 = vmatpush1.msra.mxu0 %v804
      %923 = vmatprep.subr.mxu0 0.0
      %924 = vmatpush1.msra.mxu0 %v803
      %925 = vmatprep.subr.mxu0 0.0
      %926 = vmatpush1.msra.mxu0 %v802
      %927 = vmatprep.subr.mxu0 0.0
      %928 = vmatpush1.msra.mxu0 %v801
      %929 = vmatprep.subr.mxu0 0.0
      %930 = vmatpush1.msra.mxu0 %v800
      %931 = vmatprep.subr.mxu0 0.0
      %932 = vmatpush1.msra.mxu0 %v799
      %933 = vmatprep.subr.mxu0 0.0
      %934 = vmatpush2.msra.mxu0 %v830
      %935 = vmatprep.subr.mxu0 0.0
      %936 = vmatpush2.msra.mxu0 %v829
      %937 = vmatprep.subr.mxu0 0.0
      %938 = vmatpush2.msra.mxu0 %v828
      %939 = vmatprep.subr.mxu0 0.0
      %940 = vmatpush2.msra.mxu0 %v827
      %941 = vmatprep.subr.mxu0 0.0
      %942 = vmatpush2.msra.mxu0 %v826
      %943 = vmatprep.subr.mxu0 0.0
      %944 = vmatpush2.msra.mxu0 %v825
      %945 = vmatprep.subr.mxu0 0.0
      %946 = vmatpush2.msra.mxu0 %v824
      %947 = vmatprep.subr.mxu0 0.0
      %948 = vmatpush2.msra.mxu0 %v823
      %949 = vmatprep.subr.mxu0 0.0
      %950 = vmatpush2.msra.mxu0 %v822
      %951 = vmatprep.subr.mxu0 0.0
      %952 = vmatpush2.msra.mxu0 %v821
      %953 = vmatprep.subr.mxu0 0.0
      %954 = vmatpush2.msra.mxu0 %v820
      %955 = vmatprep.subr.mxu0 0.0
      %956 = vmatpush2.msra.mxu0 %v819
      %957 = vmatprep.subr.mxu0 0.0
      %958 = vmatpush2.msra.mxu0 %v818
      %959 = vmatprep.subr.mxu0 0.0
      %960 = vmatpush2.msra.mxu0 %v817
      %961 = vmatprep.subr.mxu0 0.0
      %962 = vmatpush2.msra.mxu0 %v816
      %963 = vmatprep.subr.mxu0 0.0
      %964 = vmatpush2.msra.mxu0 %v815
      %965 = vmatprep.mubr.f32.mxu0 %v766
      %966 = vmatmul.mubr.f32.gmra.mxu0 %v765
      %v967 = vpop.f32.mrf.mxu0
      %v968 = vadd.f32 %v898, %v967
      %v969 = vpop.f32.mrf.mxu0
      %970 = vdwg.mxu0
      %v971 = vld [vmem:[%s0] sm:$0xff]
      %v973 = vsel %vm202, %v971, 0
      %975 = vmatprep.subr.mxu0 0.0
      %976 = vmatpush1.msra.mxu0 0.0
      %977 = vmatprep.subr.mxu0 0.0
      %978 = vmatpush1.msra.mxu0 0.0
      %979 = vmatprep.subr.mxu0 0.0
      %980 = vmatpush1.msra.mxu0 0.0
      %981 = vmatprep.subr.mxu0 0.0
      %982 = vmatpush1.msra.mxu0 0.0
      %983 = vmatprep.subr.mxu0 0.0
      %984 = vmatpush1.msra.mxu0 0.0
      %985 = vmatprep.subr.mxu0 0.0
      %986 = vmatpush1.msra.mxu0 0.0
      %987 = vmatprep.subr.mxu0 0.0
      %988 = vmatpush1.msra.mxu0 0.0
      %989 = vmatprep.subr.mxu0 0.0
      %990 = vmatpush1.msra.mxu0 0.0
      %991 = vmatprep.subr.mxu0 0.0
      %992 = vmatpush1.msra.mxu0 0.0
      %993 = vmatprep.subr.mxu0 0.0
      %994 = vmatpush1.msra.mxu0 0.0
      %995 = vmatprep.subr.mxu0 0.0
      %996 = vmatpush1.msra.mxu0 0.0
      %997 = vmatprep.subr.mxu0 0.0
      %998 = vmatpush1.msra.mxu0 0.0
      %999 = vmatprep.subr.mxu0 0.0
      %1000 = vmatpush1.msra.mxu0 0.0
      %1001 = vmatprep.subr.mxu0 0.0
      %1002 = vmatpush1.msra.mxu0 0.0
      %1003 = vmatprep.subr.mxu0 0.0
      %1004 = vmatpush1.msra.mxu0 0.0
      %1005 = vmatprep.subr.mxu0 0.0
      %1006 = vmatpush1.msra.mxu0 %v968
      %1007 = vmatprep.subr.mxu0 0.0
      %1008 = vmatpush2.msra.mxu0 0.0
      %1009 = vmatprep.subr.mxu0 0.0
      %1010 = vmatpush2.msra.mxu0 0.0
      %1011 = vmatprep.subr.mxu0 0.0
      %1012 = vmatpush2.msra.mxu0 0.0
      %1013 = vmatprep.subr.mxu0 0.0
      %1014 = vmatpush2.msra.mxu0 0.0
      %1015 = vmatprep.subr.mxu0 0.0
      %1016 = vmatpush2.msra.mxu0 0.0
      %1017 = vmatprep.subr.mxu0 0.0
      %1018 = vmatpush2.msra.mxu0 0.0
      %1019 = vmatprep.subr.mxu0 0.0
      %1020 = vmatpush2.msra.mxu0 0.0
      %1021 = vmatprep.subr.mxu0 0.0
      %1022 = vmatpush2.msra.mxu0 0.0
      %1023 = vmatprep.subr.mxu0 0.0
      %1024 = vmatpush2.msra.mxu0 0.0
      %1025 = vmatprep.subr.mxu0 0.0
      %1026 = vmatpush2.msra.mxu0 0.0
      %1027 = vmatprep.subr.mxu0 0.0
      %1028 = vmatpush2.msra.mxu0 0.0
      %1029 = vmatprep.subr.mxu0 0.0
      %1030 = vmatpush2.msra.mxu0 0.0
      %1031 = vmatprep.subr.mxu0 0.0
      %1032 = vmatpush2.msra.mxu0 0.0
      %1033 = vmatprep.subr.mxu0 0.0
      %1034 = vmatpush2.msra.mxu0 0.0
      %1035 = vmatprep.subr.mxu0 0.0
      %1036 = vmatpush2.msra.mxu0 0.0
      %1037 = vmatprep.subr.mxu0 0.0
      %1038 = vmatpush2.msra.mxu0 0.0
      %1039 = vmatprep.mubr.f32.mxu0 0.0
      %1040 = vmatmul.mubr.f32.gmra.mxu0 %v973
      %v1041 = vpop.f32.mrf.mxu0
      %v1042 = vadd.f32 0.0, %v1041
      %v1043 = vpop.f32.mrf.mxu0
      %1044 = vdwg.mxu0
      %1045 = vst [vmem:[#allocation4] sm:$0xff] %v1042
      %v1046 = vld [vmem:[#allocation4] sm:$0x1]
      %vm1047 = vcmp.ge.f32.partialorder %v1046, 10.0
      %v1048 = vsel %vm1047, 1, 0
      %v1049 = vcvt.s32.f32 %v1048
      %1050 = vst [vmem:[%s195] sm:$0x1] %v1049
      %v1051 = vld [vmem:[#allocation4 + $0x1] sm:$0x7f]
      %v1052 = vlaneseq
      %v1053 = vshrl.u32 %v1052, 7
      %v1054 = vsub.s32 0, %v1053
      %v1055 = vrot.slane %v1049, %v1054
      %v1056 = vmul.f32 %v369, %v1055
      %v1058 = vrot.slane %v1056, 1
      %v1060 = vadd.f32 %v1051, %v1058
      %1061 = vst [vmem:[#allocation4 + $0x1] sm:$0x7f] %v1060
      %v1062 = vld [vmem:[#allocation4 + $0x1] sm:$0x1]
      %vm1063 = vcmp.ge.f32.partialorder %v1062, 10.0
      %v1064 = vsel %vm1063, 1, 0
      %v1065 = vcvt.s32.f32 %v1064
      %1066 = vst [vmem:[%s195 + $0x1] sm:$0x1] %v1065
      %v1067 = vld [vmem:[#allocation4 + $0x2] sm:$0x3f]
      %v1068 = vlaneseq
      %v1069 = vshrl.u32 %v1068, 7
      %v1070 = vsub.s32 0, %v1069
      %v1071 = vrot.slane %v1065, %v1070
      %v1072 = vmul.f32 %v369, %v1071
      %v1074 = vrot.slane %v1072, 1
      %v1076 = vadd.f32 %v1067, %v1074
      %1077 = vst [vmem:[#allocation4 + $0x2] sm:$0x3f] %v1076
      %v1078 = vld [vmem:[#allocation4 + $0x2] sm:$0x1]
      %vm1079 = vcmp.ge.f32.partialorder %v1078, 10.0
      %v1080 = vsel %vm1079, 1, 0
      %v1081 = vcvt.s32.f32 %v1080
      %1082 = vst [vmem:[%s195 + $0x2] sm:$0x1] %v1081
      %v1083 = vld [vmem:[#allocation4 + $0x3] sm:$0x1f]
      %v1084 = vlaneseq
      %v1085 = vshrl.u32 %v1084, 7
      %v1086 = vsub.s32 0, %v1085
      %v1087 = vrot.slane %v1081, %v1086
      %v1088 = vmul.f32 %v369, %v1087
      %v1090 = vrot.slane %v1088, 1
      %v1092 = vadd.f32 %v1083, %v1090
      %1093 = vst [vmem:[#allocation4 + $0x3] sm:$0x1f] %v1092
      %v1094 = vld [vmem:[#allocation4 + $0x3] sm:$0x1]
      %vm1095 = vcmp.ge.f32.partialorder %v1094, 10.0
      %v1096 = vsel %vm1095, 1, 0
      %v1097 = vcvt.s32.f32 %v1096
      %1098 = vst [vmem:[%s195 + $0x3] sm:$0x1] %v1097
      %v1099 = vld [vmem:[#allocation4 + $0x4] sm:$0xf]
      %v1100 = vlaneseq
      %v1101 = vshrl.u32 %v1100, 7
      %v1102 = vsub.s32 0, %v1101
      %v1103 = vrot.slane %v1097, %v1102
      %v1104 = vmul.f32 %v369, %v1103
      %v1106 = vrot.slane %v1104, 1
      %v1108 = vadd.f32 %v1099, %v1106
      %1109 = vst [vmem:[#allocation4 + $0x4] sm:$0xf] %v1108
      %v1110 = vld [vmem:[#allocation4 + $0x4] sm:$0x1]
      %vm1111 = vcmp.ge.f32.partialorder %v1110, 10.0
      %v1112 = vsel %vm1111, 1, 0
      %v1113 = vcvt.s32.f32 %v1112
      %1114 = vst [vmem:[%s195 + $0x4] sm:$0x1] %v1113
      %v1115 = vld [vmem:[#allocation4 + $0x5] sm:$0x7]
      %v1116 = vlaneseq
      %v1117 = vshrl.u32 %v1116, 7
      %v1118 = vsub.s32 0, %v1117
      %v1119 = vrot.slane %v1113, %v1118
      %v1120 = vmul.f32 %v369, %v1119
      %v1122 = vrot.slane %v1120, 1
      %v1124 = vadd.f32 %v1115, %v1122
      %1125 = vst [vmem:[#allocation4 + $0x5] sm:$0x7] %v1124
      %v1126 = vld [vmem:[#allocation4 + $0x5] sm:$0x1]
      %vm1127 = vcmp.ge.f32.partialorder %v1126, 10.0
      %v1128 = vsel %vm1127, 1, 0
      %v1129 = vcvt.s32.f32 %v1128
      %1130 = vst [vmem:[%s195 + $0x5] sm:$0x1] %v1129
      %v1131 = vld [vmem:[#allocation4 + $0x6] sm:$0x3]
      %v1132 = vlaneseq
      %v1133 = vshrl.u32 %v1132, 7
      %v1134 = vsub.s32 0, %v1133
      %v1135 = vrot.slane %v1129, %v1134
      %v1136 = vmul.f32 %v369, %v1135
      %v1138 = vrot.slane %v1136, 1
      %v1140 = vadd.f32 %v1131, %v1138
      %1141 = vst [vmem:[#allocation4 + $0x6] sm:$0x3] %v1140
      %v1142 = vld [vmem:[#allocation4 + $0x6] sm:$0x1]
      %vm1143 = vcmp.ge.f32.partialorder %v1142, 10.0
      %v1144 = vsel %vm1143, 1, 0
      %v1145 = vcvt.s32.f32 %v1144
      %1146 = vst [vmem:[%s195 + $0x6] sm:$0x1] %v1145
      %v1147 = vld [vmem:[#allocation4 + $0x7] sm:$0x1]
      %v1149 = vrot.slane %v1145, 7
      %v1151 = vmul.f32 %v369, %v1149
      %v1153 = vrot.slane %v1151, 1
      %v1155 = vadd.f32 %v1147, %v1153
      %1156 = vst [vmem:[#allocation4 + $0x7] sm:$0x1] %v1155
      %v1157 = vld [vmem:[#allocation4 + $0x7] sm:$0x1]
      %vm1158 = vcmp.ge.f32.partialorder %v1157, 10.0
      %v1159 = vsel %vm1158, 1, 0
      %v1160 = vcvt.s32.f32 %v1159
      %1161 = vst [vmem:[%s195 + $0x7] sm:$0x1] %v1160
      %p1162 = scmp.lt.s32.totalorder %s15, 1
      %s1163 = scalar_select %p1162, %s15, 1
      %s1164 = smul.addr %s1163, 8
      %s1165 = scalar_lea.vmem %s4, %s1164
      // Predicated region
      $region37: #{network_forward.3} parent=35 // pred_check
        %p1166 = pneg %p122
      $region38: #{network_forward.3} parent=35 // pred_check_branch
        %1168 = sbr.rel (%p1166) target = $region40
      $region39: #{network_forward.3} parent=35 // pred_region
        _
      $region40: #{network_forward.3} parent=35 // pred_fallthru
        _
    $region36: #{network_forward.3} parent=5 // pred_fallthru
      _
    %p1169 = scmp.le.s32.totalorder 2, %s10
    // Predicated region
    $region41: #{network_forward.3} parent=5 // pred_check
      %p1170 = pneg %p1169
    $region42: #{network_forward.3} parent=5 // pred_check_branch
      %1172 = sbr.rel (%p1170) target = $region44
    $region43: #{network_forward.3} parent=5 // pred_region
      %s1173 = ssub.s32 %s10, 2
      // Predicated region
      $region45: #{network_forward.3} parent=43 // pred_check
        %p1174 = pneg %p128
      $region46: #{network_forward.3} parent=43 // pred_check_branch
        %1176 = sbr.rel (%p1174) target = $region48
      $region47: #{network_forward.3} parent=43 // pred_region
        %p1177 = scmp.lt.s32.totalorder %s16, 1
        %s1178 = scalar_select %p1177, %s16, 1
        %s1179 = smul.addr %s1178, 8
        %s1180 = scalar_lea.vmem %s4, %s1179
      $region48: #{network_forward.3} parent=43 // pred_fallthru
        _
    $region44: #{network_forward.3} parent=5 // pred_fallthru
      _
  $region6: #{network_forward.3} parent=0 // loop_footer
    %s14 = sadd.s32 1, %s10
  $region7: #{network_forward.3} parent=0 // loop_footer_branch
    %9 = sbr.rel target = $region3
  $region8: #{network_forward.3} parent=0 // loop_exit
    _

</llo_original>
